<compile_context>
chip_gen: v7x
topology: tpu7x:2x2x1
jax: 0.10.0
libtpu: 0.0.40
codegen_flags: <defaults>
</compile_context>

<pallas_src>
import jax
import jax.numpy as jnp
from jax.experimental import pallas as pl
from jax.experimental.pallas import tpu as pltpu


NEG_INF = -1e30
OUT_PAD = 128  # lane-dense padded width for the final output slab


def _leaky_relu(x, slope=0.2):
    return jnp.where(x > 0, x, slope * x)


def gat_fused_kernel(x_ref, mask_ref, w1_ref, a1_ref, b1_ref, w2_ref, p2_ref, out_ref):
    """Fused 2-layer GAT forward (all 8 heads of layer 1, ELU, layer 2) in one body."""
    f32 = jnp.float32
    bf16 = jnp.bfloat16

    N = x_ref.shape[0]
    HF1 = w1_ref.shape[1]          # heads * hid (= 64)
    H = a1_ref.shape[1] // 2       # number of heads in layer 1
    F1 = HF1 // H                  # per-head hidden size
    OUTP = w2_ref.shape[1]         # padded layer-2 width (128)

    x = x_ref[...]                 # [N, Fin]  bf16
    mask_add = mask_ref[...]       # [N, N]    f32: 0 for edge/self-loop, -1e30 otherwise

    # ---------------- layer 1: all heads in one MXU pass ----------------
    h1 = jnp.dot(x, w1_ref[...], preferred_element_type=f32)                     # [N, H*F1]
    h1_bf = h1.astype(bf16)
    # alpha[:, :H] = per-head source scores, alpha[:, H:] = per-head target scores
    alpha = jnp.dot(h1_bf, a1_ref[...], preferred_element_type=f32)              # [N, 2H]
    b1 = b1_ref[...]                                                             # [1, H*F1]

    # Layer-2 accumulator: concat(heads) @ W2 == sum_h head_h @ W2[h*F1:(h+1)*F1, :]
    h2 = jnp.zeros((N, OUTP), f32)

    for h in range(H):
        src_col = alpha[:, h:h + 1]                 # [N, 1] alpha_src (source node j)
        dst_col = alpha[:, H + h:H + h + 1]         # [N, 1] alpha_dst (target node i)
        e = dst_col + jnp.transpose(src_col)        # [N, N]  e[i, j]
        e = _leaky_relu(e) + mask_add               # mask non-edges additively
        e = e - jnp.max(e, axis=-1, keepdims=True)
        p = jnp.exp(e)
        denom = jnp.sum(p, axis=-1, keepdims=True)
        hv = h1_bf[:, h * F1:(h + 1) * F1]          # [N, F1]
        o = jnp.dot(p.astype(bf16), hv, preferred_element_type=f32)              # [N, F1]
        # normalize AFTER aggregation (divide on [N,F1], reciprocal on EUP slot)
        o = o * pl.reciprocal(denom, approx=True) + b1[:, h * F1:(h + 1) * F1]
        # ELU (clamp keeps exp finite on the discarded branch)
        o = jnp.where(o > 0, o, jnp.exp(jnp.minimum(o, 0.0)) - 1.0)
        # TODO(synk): nn.Dropout(0.6) between layers is identity in eval mode; omitted.
        h2 = h2 + jnp.dot(o.astype(bf16), w2_ref[h * F1:(h + 1) * F1, :],
                          preferred_element_type=f32)                            # [N, OUTP]

    # ---------------- layer 2: single head, lane-dense padded output ----------------
    p2 = p2_ref[...]                                # [3, OUTP]: att_src / att_dst / bias
    a2_src = jnp.sum(h2 * p2[0:1, :], axis=-1, keepdims=True)                    # [N, 1]
    a2_dst = jnp.sum(h2 * p2[1:2, :], axis=-1, keepdims=True)                    # [N, 1]
    e2 = a2_dst + jnp.transpose(a2_src)
    e2 = _leaky_relu(e2) + mask_add
    e2 = e2 - jnp.max(e2, axis=-1, keepdims=True)
    pr = jnp.exp(e2)
    den2 = jnp.sum(pr, axis=-1, keepdims=True)
    o2 = jnp.dot(pr.astype(bf16), h2.astype(bf16), preferred_element_type=f32)   # [N, OUTP]
    o2 = o2 * pl.reciprocal(den2, approx=True) + p2[2:3, :]
    # TODO(synk): attention dropout (p=0.6) only applies in training mode; omitted (eval).
    out_ref[...] = o2.astype(out_ref.dtype)


def init_params(key, in_features=32, hid=8, heads=8, out_features=7):
    def glorot(key, shape, fan_in, fan_out):
        limit = jnp.sqrt(6.0 / (fan_in + fan_out))
        return jax.random.uniform(key, shape, jnp.float32, -limit, limit)

    k = jax.random.split(key, 6)
    return {
        # layer 1: GATConv(in_features -> hid, heads)
        "w1": glorot(k[0], (heads, in_features, hid), in_features, heads * hid),
        "asrc1": glorot(k[1], (heads, 1, hid), hid, 1),
        "adst1": glorot(k[2], (heads, 1, hid), hid, 1),
        "b1": jnp.zeros((heads, 1, hid), jnp.float32),
        # layer 2: GATConv(hid*heads -> out_features, heads=1, concat=False)
        "w2": glorot(k[3], (1, hid * heads, out_features), hid * heads, out_features),
        "asrc2": glorot(k[4], (1, 1, out_features), out_features, 1),
        "adst2": glorot(k[5], (1, 1, out_features), out_features, 1),
        "b2": jnp.zeros((1, 1, out_features), jnp.float32),
    }


@jax.jit
def gat_forward(x, edge_index, params):
    N, Fin = x.shape
    H, _, F1 = params["w1"].shape
    F2 = params["w2"].shape[2]

    # Dense ADDITIVE mask built once and shared by both layers:
    # 0 where edge (source j -> target i) or self-loop exists, -1e30 otherwise.
    # (PyG GATConv: flow="source_to_target", add_self_loops=True.)
    adj = jnp.zeros((N, N), jnp.float32)
    adj = adj.at[edge_index[1], edge_index[0]].set(1.0)
    adj = adj.at[jnp.arange(N), jnp.arange(N)].set(1.0)
    mask_add = jnp.where(adj > 0, 0.0, NEG_INF).astype(jnp.float32)

    # ---- pack / pad parameters (tiny, traced once under jit) ----
    # layer-1 weights flattened head-major: column h*F1+f <=> head h, feature f
    w1f = jnp.transpose(params["w1"], (1, 0, 2)).reshape(Fin, H * F1).astype(jnp.bfloat16)
    # block-structured attention projection: alpha = h1 @ A1, A1 = [src-blocks | dst-blocks]
    eye = jnp.eye(H, dtype=jnp.float32)
    a_src = (params["asrc1"][:, 0, :, None] * eye[:, None, :]).reshape(H * F1, H)
    a_dst = (params["adst1"][:, 0, :, None] * eye[:, None, :]).reshape(H * F1, H)
    a1 = jnp.concatenate([a_src, a_dst], axis=1).astype(jnp.bfloat16)            # [H*F1, 2H]
    b1f = params["b1"].reshape(1, H * F1)                                        # [1, H*F1]
    # layer-2 weights padded to a lane-dense 128-wide slab
    w2p = jnp.zeros((H * F1, OUT_PAD), jnp.float32).at[:, :F2].set(params["w2"][0])
    w2p = w2p.astype(jnp.bfloat16)
    # layer-2 att_src / att_dst / bias packed into one [3, 128] array
    p2 = jnp.zeros((3, OUT_PAD), jnp.float32)
    p2 = p2.at[0, :F2].set(params["asrc2"][0, 0])
    p2 = p2.at[1, :F2].set(params["adst2"][0, 0])
    p2 = p2.at[2, :F2].set(params["b2"][0, 0])

    # TODO(synk): the leading nn.Dropout(0.6) is identity in eval mode; omitted.
    vmem = pl.BlockSpec(memory_space=pltpu.MemorySpace.VMEM)
    out = pl.pallas_call(
        gat_fused_kernel,
        out_shape=jax.ShapeDtypeStruct((N, OUT_PAD), jnp.float32),
        in_specs=[vmem] * 7,
        out_specs=vmem,
    )(x.astype(jnp.bfloat16), mask_add, w1f, a1, b1f, w2p, p2)
    return out[:, :F2]


if __name__ == "__main__":
    N, IN_FEATURES, HID, HEADS, OUT_FEATURES, E = 16, 32, 8, 8, 7, 40

    key = jax.random.PRNGKey(0)
    k_x, k_src, k_dst, k_param = jax.random.split(key, 4)

    x = jax.random.normal(k_x, (N, IN_FEATURES), jnp.float32)
    edge_index = jnp.stack([
        jax.random.randint(k_src, (E,), 0, N, jnp.int32),
        jax.random.randint(k_dst, (E,), 0, N, jnp.int32),
    ], axis=0)                                                 # [2, E]

    params = init_params(k_param, IN_FEATURES, HID, HEADS, OUT_FEATURES)

    out = gat_forward(x, edge_index, params)
    out = jax.block_until_ready(out)
    assert out.shape == (N, OUT_FEATURES), out.shape
    assert jnp.all(jnp.isfinite(out))
    print("KERNEL_OK")
</pallas_src>

<mosaic_0001>
module attributes {stable_mosaic.version = 11 : i64} {
  func.func @gat_fused_kernel(%arg0: memref<16x32xbf16, #tpu.memory_space<vmem>>, %arg1: memref<16x16xf32, #tpu.memory_space<vmem>>, %arg2: memref<32x64xbf16, #tpu.memory_space<vmem>>, %arg3: memref<64x16xbf16, #tpu.memory_space<vmem>>, %arg4: memref<1x64xf32, #tpu.memory_space<vmem>>, %arg5: memref<64x128xbf16, #tpu.memory_space<vmem>>, %arg6: memref<3x128xf32, #tpu.memory_space<vmem>>, %arg7: memref<16x128xf32, #tpu.memory_space<vmem>>) attributes {dimension_semantics = [], scalar_prefetch = 0 : i64, scratch_operands = 0 : i64, tpu.core_type = #tpu.core_type<tc>} {
    %c0 = arith.constant 0 : index
    %c0_0 = arith.constant 0 : index
    %0 = vector.load %arg0[%c0, %c0_0] : memref<16x32xbf16, #tpu.memory_space<vmem>>, vector<16x32xbf16>
    %c0_1 = arith.constant 0 : index
    %c0_2 = arith.constant 0 : index
    %1 = vector.load %arg1[%c0_1, %c0_2] : memref<16x16xf32, #tpu.memory_space<vmem>>, vector<16x16xf32>
    %c0_3 = arith.constant 0 : index
    %c0_4 = arith.constant 0 : index
    %2 = vector.load %arg2[%c0_3, %c0_4] : memref<32x64xbf16, #tpu.memory_space<vmem>>, vector<32x64xbf16>
    %cst = arith.constant dense<0.000000e+00> : vector<16x64xf32>
    %3 = tpu.matmul %0, %2, %cst {dimension_numbers = #tpu.dot_dimension_numbers<[1], [0], [0], [1], [0, 0, 1, 1], [], []>} : vector<16x32xbf16>, vector<32x64xbf16>, vector<16x64xf32> -> vector<16x64xf32>
    %4 = arith.truncf %3 : vector<16x64xf32> to vector<16x64xbf16>
    %c0_5 = arith.constant 0 : index
    %c0_6 = arith.constant 0 : index
    %5 = vector.load %arg3[%c0_5, %c0_6] : memref<64x16xbf16, #tpu.memory_space<vmem>>, vector<64x16xbf16>
    %cst_7 = arith.constant dense<0.000000e+00> : vector<16x16xf32>
    %6 = tpu.matmul %4, %5, %cst_7 {dimension_numbers = #tpu.dot_dimension_numbers<[1], [0], [0], [1], [0, 0, 1, 1], [], []>} : vector<16x64xbf16>, vector<64x16xbf16>, vector<16x16xf32> -> vector<16x16xf32>
    %c0_8 = arith.constant 0 : index
    %c0_9 = arith.constant 0 : index
    %7 = vector.load %arg4[%c0_8, %c0_9] : memref<1x64xf32, #tpu.memory_space<vmem>>, vector<1x64xf32>
    %cst_10 = arith.constant 0.000000e+00 : f32
    %8 = vector.broadcast %cst_10 : f32 to vector<16x128xf32>
    %9 = vector.extract_strided_slice %6 {offsets = [0, 0], sizes = [16, 1], strides = [1, 1]} : vector<16x16xf32> to vector<16x1xf32>
    %10 = vector.extract_strided_slice %6 {offsets = [0, 8], sizes = [16, 1], strides = [1, 1]} : vector<16x16xf32> to vector<16x1xf32>
    %11 = tpu.transpose %9, [1, 0] : vector<16x1xf32> -> vector<1x16xf32>
    %12 = vector.broadcast %10 : vector<16x1xf32> to vector<16x16xf32>
    %13 = vector.broadcast %11 : vector<1x16xf32> to vector<16x16xf32>
    %14 = arith.addf %12, %13 : vector<16x16xf32>
    %cst_11 = arith.constant 0.000000e+00 : f32
    %15 = vector.broadcast %cst_11 : f32 to vector<16x16xf32>
    %16 = arith.cmpf ogt, %14, %15 : vector<16x16xf32>
    %cst_12 = arith.constant 2.000000e-01 : f32
    %17 = vector.broadcast %cst_12 : f32 to vector<16x16xf32>
    %18 = arith.mulf %17, %14 : vector<16x16xf32>
    %19 = arith.select %16, %14, %18 : vector<16x16xi1>, vector<16x16xf32>
    %20 = arith.addf %19, %1 : vector<16x16xf32>
    %cst_13 = arith.constant dense<0xFF800000> : vector<16xf32>
    %21 = vector.multi_reduction <maximumf>, %20, %cst_13 [1] : vector<16x16xf32> to vector<16xf32>
    %22 = vector.shape_cast %21 : vector<16xf32> to vector<16x1xf32>
    %23 = vector.broadcast %22 : vector<16x1xf32> to vector<16x16xf32>
    %24 = arith.subf %20, %23 : vector<16x16xf32>
    %25 = math.exp %24 : vector<16x16xf32>
    %cst_14 = arith.constant dense<0.000000e+00> : vector<16xf32>
    %26 = vector.multi_reduction <add>, %25, %cst_14 [1] : vector<16x16xf32> to vector<16xf32>
    %27 = vector.shape_cast %26 : vector<16xf32> to vector<16x1xf32>
    %28 = vector.extract_strided_slice %4 {offsets = [0, 0], sizes = [16, 8], strides = [1, 1]} : vector<16x64xbf16> to vector<16x8xbf16>
    %29 = arith.truncf %25 : vector<16x16xf32> to vector<16x16xbf16>
    %cst_15 = arith.constant dense<0.000000e+00> : vector<16x8xf32>
    %30 = tpu.matmul %29, %28, %cst_15 {dimension_numbers = #tpu.dot_dimension_numbers<[1], [0], [0], [1], [0, 0, 1, 1], [], []>} : vector<16x16xbf16>, vector<16x8xbf16>, vector<16x8xf32> -> vector<16x8xf32>
    %31 = tpu.reciprocal %27 {approx = true} : vector<16x1xf32> -> vector<16x1xf32>
    %32 = vector.broadcast %31 : vector<16x1xf32> to vector<16x8xf32>
    %33 = arith.mulf %30, %32 : vector<16x8xf32>
    %34 = vector.extract_strided_slice %7 {offsets = [0, 0], sizes = [1, 8], strides = [1, 1]} : vector<1x64xf32> to vector<1x8xf32>
    %35 = vector.broadcast %34 : vector<1x8xf32> to vector<16x8xf32>
    %36 = arith.addf %33, %35 : vector<16x8xf32>
    %cst_16 = arith.constant 0.000000e+00 : f32
    %37 = vector.broadcast %cst_16 : f32 to vector<16x8xf32>
    %38 = arith.cmpf ogt, %36, %37 : vector<16x8xf32>
    %cst_17 = arith.constant 0.000000e+00 : f32
    %39 = vector.broadcast %cst_17 : f32 to vector<16x8xf32>
    %40 = arith.minimumf %36, %39 : vector<16x8xf32>
    %41 = math.exp %40 : vector<16x8xf32>
    %cst_18 = arith.constant 1.000000e+00 : f32
    %42 = vector.broadcast %cst_18 : f32 to vector<16x8xf32>
    %43 = arith.subf %41, %42 : vector<16x8xf32>
    %44 = arith.select %38, %36, %43 : vector<16x8xi1>, vector<16x8xf32>
    %45 = arith.truncf %44 : vector<16x8xf32> to vector<16x8xbf16>
    %c0_19 = arith.constant 0 : index
    %c0_20 = arith.constant 0 : index
    %46 = vector.load %arg5[%c0_19, %c0_20] : memref<64x128xbf16, #tpu.memory_space<vmem>>, vector<8x128xbf16>
    %cst_21 = arith.constant dense<0.000000e+00> : vector<16x128xf32>
    %47 = tpu.matmul %45, %46, %cst_21 {dimension_numbers = #tpu.dot_dimension_numbers<[1], [0], [0], [1], [0, 0, 1, 1], [], []>} : vector<16x8xbf16>, vector<8x128xbf16>, vector<16x128xf32> -> vector<16x128xf32>
    %48 = arith.addf %8, %47 : vector<16x128xf32>
    %49 = vector.extract_strided_slice %6 {offsets = [0, 1], sizes = [16, 1], strides = [1, 1]} : vector<16x16xf32> to vector<16x1xf32>
    %50 = vector.extract_strided_slice %6 {offsets = [0, 9], sizes = [16, 1], strides = [1, 1]} : vector<16x16xf32> to vector<16x1xf32>
    %51 = tpu.transpose %49, [1, 0] : vector<16x1xf32> -> vector<1x16xf32>
    %52 = vector.broadcast %50 : vector<16x1xf32> to vector<16x16xf32>
    %53 = vector.broadcast %51 : vector<1x16xf32> to vector<16x16xf32>
    %54 = arith.addf %52, %53 : vector<16x16xf32>
    %cst_22 = arith.constant 0.000000e+00 : f32
    %55 = vector.broadcast %cst_22 : f32 to vector<16x16xf32>
    %56 = arith.cmpf ogt, %54, %55 : vector<16x16xf32>
    %cst_23 = arith.constant 2.000000e-01 : f32
    %57 = vector.broadcast %cst_23 : f32 to vector<16x16xf32>
    %58 = arith.mulf %57, %54 : vector<16x16xf32>
    %59 = arith.select %56, %54, %58 : vector<16x16xi1>, vector<16x16xf32>
    %60 = arith.addf %59, %1 : vector<16x16xf32>
    %cst_24 = arith.constant dense<0xFF800000> : vector<16xf32>
    %61 = vector.multi_reduction <maximumf>, %60, %cst_24 [1] : vector<16x16xf32> to vector<16xf32>
    %62 = vector.shape_cast %61 : vector<16xf32> to vector<16x1xf32>
    %63 = vector.broadcast %62 : vector<16x1xf32> to vector<16x16xf32>
    %64 = arith.subf %60, %63 : vector<16x16xf32>
    %65 = math.exp %64 : vector<16x16xf32>
    %cst_25 = arith.constant dense<0.000000e+00> : vector<16xf32>
    %66 = vector.multi_reduction <add>, %65, %cst_25 [1] : vector<16x16xf32> to vector<16xf32>
    %67 = vector.shape_cast %66 : vector<16xf32> to vector<16x1xf32>
    %68 = vector.extract_strided_slice %4 {offsets = [0, 8], sizes = [16, 8], strides = [1, 1]} : vector<16x64xbf16> to vector<16x8xbf16>
    %69 = arith.truncf %65 : vector<16x16xf32> to vector<16x16xbf16>
    %cst_26 = arith.constant dense<0.000000e+00> : vector<16x8xf32>
    %70 = tpu.matmul %69, %68, %cst_26 {dimension_numbers = #tpu.dot_dimension_numbers<[1], [0], [0], [1], [0, 0, 1, 1], [], []>} : vector<16x16xbf16>, vector<16x8xbf16>, vector<16x8xf32> -> vector<16x8xf32>
    %71 = tpu.reciprocal %67 {approx = true} : vector<16x1xf32> -> vector<16x1xf32>
    %72 = vector.broadcast %71 : vector<16x1xf32> to vector<16x8xf32>
    %73 = arith.mulf %70, %72 : vector<16x8xf32>
    %74 = vector.extract_strided_slice %7 {offsets = [0, 8], sizes = [1, 8], strides = [1, 1]} : vector<1x64xf32> to vector<1x8xf32>
    %75 = vector.broadcast %74 : vector<1x8xf32> to vector<16x8xf32>
    %76 = arith.addf %73, %75 : vector<16x8xf32>
    %cst_27 = arith.constant 0.000000e+00 : f32
    %77 = vector.broadcast %cst_27 : f32 to vector<16x8xf32>
    %78 = arith.cmpf ogt, %76, %77 : vector<16x8xf32>
    %cst_28 = arith.constant 0.000000e+00 : f32
    %79 = vector.broadcast %cst_28 : f32 to vector<16x8xf32>
    %80 = arith.minimumf %76, %79 : vector<16x8xf32>
    %81 = math.exp %80 : vector<16x8xf32>
    %cst_29 = arith.constant 1.000000e+00 : f32
    %82 = vector.broadcast %cst_29 : f32 to vector<16x8xf32>
    %83 = arith.subf %81, %82 : vector<16x8xf32>
    %84 = arith.select %78, %76, %83 : vector<16x8xi1>, vector<16x8xf32>
    %85 = arith.truncf %84 : vector<16x8xf32> to vector<16x8xbf16>
    %c8 = arith.constant 8 : index
    %c0_30 = arith.constant 0 : index
    %86 = vector.load %arg5[%c8, %c0_30] : memref<64x128xbf16, #tpu.memory_space<vmem>>, vector<8x128xbf16>
    %cst_31 = arith.constant dense<0.000000e+00> : vector<16x128xf32>
    %87 = tpu.matmul %85, %86, %cst_31 {dimension_numbers = #tpu.dot_dimension_numbers<[1], [0], [0], [1], [0, 0, 1, 1], [], []>} : vector<16x8xbf16>, vector<8x128xbf16>, vector<16x128xf32> -> vector<16x128xf32>
    %88 = arith.addf %48, %87 : vector<16x128xf32>
    %89 = vector.extract_strided_slice %6 {offsets = [0, 2], sizes = [16, 1], strides = [1, 1]} : vector<16x16xf32> to vector<16x1xf32>
    %90 = vector.extract_strided_slice %6 {offsets = [0, 10], sizes = [16, 1], strides = [1, 1]} : vector<16x16xf32> to vector<16x1xf32>
    %91 = tpu.transpose %89, [1, 0] : vector<16x1xf32> -> vector<1x16xf32>
    %92 = vector.broadcast %90 : vector<16x1xf32> to vector<16x16xf32>
    %93 = vector.broadcast %91 : vector<1x16xf32> to vector<16x16xf32>
    %94 = arith.addf %92, %93 : vector<16x16xf32>
    %cst_32 = arith.constant 0.000000e+00 : f32
    %95 = vector.broadcast %cst_32 : f32 to vector<16x16xf32>
    %96 = arith.cmpf ogt, %94, %95 : vector<16x16xf32>
    %cst_33 = arith.constant 2.000000e-01 : f32
    %97 = vector.broadcast %cst_33 : f32 to vector<16x16xf32>
    %98 = arith.mulf %97, %94 : vector<16x16xf32>
    %99 = arith.select %96, %94, %98 : vector<16x16xi1>, vector<16x16xf32>
    %100 = arith.addf %99, %1 : vector<16x16xf32>
    %cst_34 = arith.constant dense<0xFF800000> : vector<16xf32>
    %101 = vector.multi_reduction <maximumf>, %100, %cst_34 [1] : vector<16x16xf32> to vector<16xf32>
    %102 = vector.shape_cast %101 : vector<16xf32> to vector<16x1xf32>
    %103 = vector.broadcast %102 : vector<16x1xf32> to vector<16x16xf32>
    %104 = arith.subf %100, %103 : vector<16x16xf32>
    %105 = math.exp %104 : vector<16x16xf32>
    %cst_35 = arith.constant dense<0.000000e+00> : vector<16xf32>
    %106 = vector.multi_reduction <add>, %105, %cst_35 [1] : vector<16x16xf32> to vector<16xf32>
    %107 = vector.shape_cast %106 : vector<16xf32> to vector<16x1xf32>
    %108 = vector.extract_strided_slice %4 {offsets = [0, 16], sizes = [16, 8], strides = [1, 1]} : vector<16x64xbf16> to vector<16x8xbf16>
    %109 = arith.truncf %105 : vector<16x16xf32> to vector<16x16xbf16>
    %cst_36 = arith.constant dense<0.000000e+00> : vector<16x8xf32>
    %110 = tpu.matmul %109, %108, %cst_36 {dimension_numbers = #tpu.dot_dimension_numbers<[1], [0], [0], [1], [0, 0, 1, 1], [], []>} : vector<16x16xbf16>, vector<16x8xbf16>, vector<16x8xf32> -> vector<16x8xf32>
    %111 = tpu.reciprocal %107 {approx = true} : vector<16x1xf32> -> vector<16x1xf32>
    %112 = vector.broadcast %111 : vector<16x1xf32> to vector<16x8xf32>
    %113 = arith.mulf %110, %112 : vector<16x8xf32>
    %114 = vector.extract_strided_slice %7 {offsets = [0, 16], sizes = [1, 8], strides = [1, 1]} : vector<1x64xf32> to vector<1x8xf32>
    %115 = vector.broadcast %114 : vector<1x8xf32> to vector<16x8xf32>
    %116 = arith.addf %113, %115 : vector<16x8xf32>
    %cst_37 = arith.constant 0.000000e+00 : f32
    %117 = vector.broadcast %cst_37 : f32 to vector<16x8xf32>
    %118 = arith.cmpf ogt, %116, %117 : vector<16x8xf32>
    %cst_38 = arith.constant 0.000000e+00 : f32
    %119 = vector.broadcast %cst_38 : f32 to vector<16x8xf32>
    %120 = arith.minimumf %116, %119 : vector<16x8xf32>
    %121 = math.exp %120 : vector<16x8xf32>
    %cst_39 = arith.constant 1.000000e+00 : f32
    %122 = vector.broadcast %cst_39 : f32 to vector<16x8xf32>
    %123 = arith.subf %121, %122 : vector<16x8xf32>
    %124 = arith.select %118, %116, %123 : vector<16x8xi1>, vector<16x8xf32>
    %125 = arith.truncf %124 : vector<16x8xf32> to vector<16x8xbf16>
    %c16 = arith.constant 16 : index
    %c0_40 = arith.constant 0 : index
    %126 = vector.load %arg5[%c16, %c0_40] : memref<64x128xbf16, #tpu.memory_space<vmem>>, vector<8x128xbf16>
    %cst_41 = arith.constant dense<0.000000e+00> : vector<16x128xf32>
    %127 = tpu.matmul %125, %126, %cst_41 {dimension_numbers = #tpu.dot_dimension_numbers<[1], [0], [0], [1], [0, 0, 1, 1], [], []>} : vector<16x8xbf16>, vector<8x128xbf16>, vector<16x128xf32> -> vector<16x128xf32>
    %128 = arith.addf %88, %127 : vector<16x128xf32>
    %129 = vector.extract_strided_slice %6 {offsets = [0, 3], sizes = [16, 1], strides = [1, 1]} : vector<16x16xf32> to vector<16x1xf32>
    %130 = vector.extract_strided_slice %6 {offsets = [0, 11], sizes = [16, 1], strides = [1, 1]} : vector<16x16xf32> to vector<16x1xf32>
    %131 = tpu.transpose %129, [1, 0] : vector<16x1xf32> -> vector<1x16xf32>
    %132 = vector.broadcast %130 : vector<16x1xf32> to vector<16x16xf32>
    %133 = vector.broadcast %131 : vector<1x16xf32> to vector<16x16xf32>
    %134 = arith.addf %132, %133 : vector<16x16xf32>
    %cst_42 = arith.constant 0.000000e+00 : f32
    %135 = vector.broadcast %cst_42 : f32 to vector<16x16xf32>
    %136 = arith.cmpf ogt, %134, %135 : vector<16x16xf32>
    %cst_43 = arith.constant 2.000000e-01 : f32
    %137 = vector.broadcast %cst_43 : f32 to vector<16x16xf32>
    %138 = arith.mulf %137, %134 : vector<16x16xf32>
    %139 = arith.select %136, %134, %138 : vector<16x16xi1>, vector<16x16xf32>
    %140 = arith.addf %139, %1 : vector<16x16xf32>
    %cst_44 = arith.constant dense<0xFF800000> : vector<16xf32>
    %141 = vector.multi_reduction <maximumf>, %140, %cst_44 [1] : vector<16x16xf32> to vector<16xf32>
    %142 = vector.shape_cast %141 : vector<16xf32> to vector<16x1xf32>
    %143 = vector.broadcast %142 : vector<16x1xf32> to vector<16x16xf32>
    %144 = arith.subf %140, %143 : vector<16x16xf32>
    %145 = math.exp %144 : vector<16x16xf32>
    %cst_45 = arith.constant dense<0.000000e+00> : vector<16xf32>
    %146 = vector.multi_reduction <add>, %145, %cst_45 [1] : vector<16x16xf32> to vector<16xf32>
    %147 = vector.shape_cast %146 : vector<16xf32> to vector<16x1xf32>
    %148 = vector.extract_strided_slice %4 {offsets = [0, 24], sizes = [16, 8], strides = [1, 1]} : vector<16x64xbf16> to vector<16x8xbf16>
    %149 = arith.truncf %145 : vector<16x16xf32> to vector<16x16xbf16>
    %cst_46 = arith.constant dense<0.000000e+00> : vector<16x8xf32>
    %150 = tpu.matmul %149, %148, %cst_46 {dimension_numbers = #tpu.dot_dimension_numbers<[1], [0], [0], [1], [0, 0, 1, 1], [], []>} : vector<16x16xbf16>, vector<16x8xbf16>, vector<16x8xf32> -> vector<16x8xf32>
    %151 = tpu.reciprocal %147 {approx = true} : vector<16x1xf32> -> vector<16x1xf32>
    %152 = vector.broadcast %151 : vector<16x1xf32> to vector<16x8xf32>
    %153 = arith.mulf %150, %152 : vector<16x8xf32>
    %154 = vector.extract_strided_slice %7 {offsets = [0, 24], sizes = [1, 8], strides = [1, 1]} : vector<1x64xf32> to vector<1x8xf32>
    %155 = vector.broadcast %154 : vector<1x8xf32> to vector<16x8xf32>
    %156 = arith.addf %153, %155 : vector<16x8xf32>
    %cst_47 = arith.constant 0.000000e+00 : f32
    %157 = vector.broadcast %cst_47 : f32 to vector<16x8xf32>
    %158 = arith.cmpf ogt, %156, %157 : vector<16x8xf32>
    %cst_48 = arith.constant 0.000000e+00 : f32
    %159 = vector.broadcast %cst_48 : f32 to vector<16x8xf32>
    %160 = arith.minimumf %156, %159 : vector<16x8xf32>
    %161 = math.exp %160 : vector<16x8xf32>
    %cst_49 = arith.constant 1.000000e+00 : f32
    %162 = vector.broadcast %cst_49 : f32 to vector<16x8xf32>
    %163 = arith.subf %161, %162 : vector<16x8xf32>
    %164 = arith.select %158, %156, %163 : vector<16x8xi1>, vector<16x8xf32>
    %165 = arith.truncf %164 : vector<16x8xf32> to vector<16x8xbf16>
    %c24 = arith.constant 24 : index
    %c0_50 = arith.constant 0 : index
    %166 = vector.load %arg5[%c24, %c0_50] : memref<64x128xbf16, #tpu.memory_space<vmem>>, vector<8x128xbf16>
    %cst_51 = arith.constant dense<0.000000e+00> : vector<16x128xf32>
    %167 = tpu.matmul %165, %166, %cst_51 {dimension_numbers = #tpu.dot_dimension_numbers<[1], [0], [0], [1], [0, 0, 1, 1], [], []>} : vector<16x8xbf16>, vector<8x128xbf16>, vector<16x128xf32> -> vector<16x128xf32>
    %168 = arith.addf %128, %167 : vector<16x128xf32>
    %169 = vector.extract_strided_slice %6 {offsets = [0, 4], sizes = [16, 1], strides = [1, 1]} : vector<16x16xf32> to vector<16x1xf32>
    %170 = vector.extract_strided_slice %6 {offsets = [0, 12], sizes = [16, 1], strides = [1, 1]} : vector<16x16xf32> to vector<16x1xf32>
    %171 = tpu.transpose %169, [1, 0] : vector<16x1xf32> -> vector<1x16xf32>
    %172 = vector.broadcast %170 : vector<16x1xf32> to vector<16x16xf32>
    %173 = vector.broadcast %171 : vector<1x16xf32> to vector<16x16xf32>
    %174 = arith.addf %172, %173 : vector<16x16xf32>
    %cst_52 = arith.constant 0.000000e+00 : f32
    %175 = vector.broadcast %cst_52 : f32 to vector<16x16xf32>
    %176 = arith.cmpf ogt, %174, %175 : vector<16x16xf32>
    %cst_53 = arith.constant 2.000000e-01 : f32
    %177 = vector.broadcast %cst_53 : f32 to vector<16x16xf32>
    %178 = arith.mulf %177, %174 : vector<16x16xf32>
    %179 = arith.select %176, %174, %178 : vector<16x16xi1>, vector<16x16xf32>
    %180 = arith.addf %179, %1 : vector<16x16xf32>
    %cst_54 = arith.constant dense<0xFF800000> : vector<16xf32>
    %181 = vector.multi_reduction <maximumf>, %180, %cst_54 [1] : vector<16x16xf32> to vector<16xf32>
    %182 = vector.shape_cast %181 : vector<16xf32> to vector<16x1xf32>
    %183 = vector.broadcast %182 : vector<16x1xf32> to vector<16x16xf32>
    %184 = arith.subf %180, %183 : vector<16x16xf32>
    %185 = math.exp %184 : vector<16x16xf32>
    %cst_55 = arith.constant dense<0.000000e+00> : vector<16xf32>
    %186 = vector.multi_reduction <add>, %185, %cst_55 [1] : vector<16x16xf32> to vector<16xf32>
    %187 = vector.shape_cast %186 : vector<16xf32> to vector<16x1xf32>
    %188 = vector.extract_strided_slice %4 {offsets = [0, 32], sizes = [16, 8], strides = [1, 1]} : vector<16x64xbf16> to vector<16x8xbf16>
    %189 = arith.truncf %185 : vector<16x16xf32> to vector<16x16xbf16>
    %cst_56 = arith.constant dense<0.000000e+00> : vector<16x8xf32>
    %190 = tpu.matmul %189, %188, %cst_56 {dimension_numbers = #tpu.dot_dimension_numbers<[1], [0], [0], [1], [0, 0, 1, 1], [], []>} : vector<16x16xbf16>, vector<16x8xbf16>, vector<16x8xf32> -> vector<16x8xf32>
    %191 = tpu.reciprocal %187 {approx = true} : vector<16x1xf32> -> vector<16x1xf32>
    %192 = vector.broadcast %191 : vector<16x1xf32> to vector<16x8xf32>
    %193 = arith.mulf %190, %192 : vector<16x8xf32>
    %194 = vector.extract_strided_slice %7 {offsets = [0, 32], sizes = [1, 8], strides = [1, 1]} : vector<1x64xf32> to vector<1x8xf32>
    %195 = vector.broadcast %194 : vector<1x8xf32> to vector<16x8xf32>
    %196 = arith.addf %193, %195 : vector<16x8xf32>
    %cst_57 = arith.constant 0.000000e+00 : f32
    %197 = vector.broadcast %cst_57 : f32 to vector<16x8xf32>
    %198 = arith.cmpf ogt, %196, %197 : vector<16x8xf32>
    %cst_58 = arith.constant 0.000000e+00 : f32
    %199 = vector.broadcast %cst_58 : f32 to vector<16x8xf32>
    %200 = arith.minimumf %196, %199 : vector<16x8xf32>
    %201 = math.exp %200 : vector<16x8xf32>
    %cst_59 = arith.constant 1.000000e+00 : f32
    %202 = vector.broadcast %cst_59 : f32 to vector<16x8xf32>
    %203 = arith.subf %201, %202 : vector<16x8xf32>
    %204 = arith.select %198, %196, %203 : vector<16x8xi1>, vector<16x8xf32>
    %205 = arith.truncf %204 : vector<16x8xf32> to vector<16x8xbf16>
    %c32 = arith.constant 32 : index
    %c0_60 = arith.constant 0 : index
    %206 = vector.load %arg5[%c32, %c0_60] : memref<64x128xbf16, #tpu.memory_space<vmem>>, vector<8x128xbf16>
    %cst_61 = arith.constant dense<0.000000e+00> : vector<16x128xf32>
    %207 = tpu.matmul %205, %206, %cst_61 {dimension_numbers = #tpu.dot_dimension_numbers<[1], [0], [0], [1], [0, 0, 1, 1], [], []>} : vector<16x8xbf16>, vector<8x128xbf16>, vector<16x128xf32> -> vector<16x128xf32>
    %208 = arith.addf %168, %207 : vector<16x128xf32>
    %209 = vector.extract_strided_slice %6 {offsets = [0, 5], sizes = [16, 1], strides = [1, 1]} : vector<16x16xf32> to vector<16x1xf32>
    %210 = vector.extract_strided_slice %6 {offsets = [0, 13], sizes = [16, 1], strides = [1, 1]} : vector<16x16xf32> to vector<16x1xf32>
    %211 = tpu.transpose %209, [1, 0] : vector<16x1xf32> -> vector<1x16xf32>
    %212 = vector.broadcast %210 : vector<16x1xf32> to vector<16x16xf32>
    %213 = vector.broadcast %211 : vector<1x16xf32> to vector<16x16xf32>
    %214 = arith.addf %212, %213 : vector<16x16xf32>
    %cst_62 = arith.constant 0.000000e+00 : f32
    %215 = vector.broadcast %cst_62 : f32 to vector<16x16xf32>
    %216 = arith.cmpf ogt, %214, %215 : vector<16x16xf32>
    %cst_63 = arith.constant 2.000000e-01 : f32
    %217 = vector.broadcast %cst_63 : f32 to vector<16x16xf32>
    %218 = arith.mulf %217, %214 : vector<16x16xf32>
    %219 = arith.select %216, %214, %218 : vector<16x16xi1>, vector<16x16xf32>
    %220 = arith.addf %219, %1 : vector<16x16xf32>
    %cst_64 = arith.constant dense<0xFF800000> : vector<16xf32>
    %221 = vector.multi_reduction <maximumf>, %220, %cst_64 [1] : vector<16x16xf32> to vector<16xf32>
    %222 = vector.shape_cast %221 : vector<16xf32> to vector<16x1xf32>
    %223 = vector.broadcast %222 : vector<16x1xf32> to vector<16x16xf32>
    %224 = arith.subf %220, %223 : vector<16x16xf32>
    %225 = math.exp %224 : vector<16x16xf32>
    %cst_65 = arith.constant dense<0.000000e+00> : vector<16xf32>
    %226 = vector.multi_reduction <add>, %225, %cst_65 [1] : vector<16x16xf32> to vector<16xf32>
    %227 = vector.shape_cast %226 : vector<16xf32> to vector<16x1xf32>
    %228 = vector.extract_strided_slice %4 {offsets = [0, 40], sizes = [16, 8], strides = [1, 1]} : vector<16x64xbf16> to vector<16x8xbf16>
    %229 = arith.truncf %225 : vector<16x16xf32> to vector<16x16xbf16>
    %cst_66 = arith.constant dense<0.000000e+00> : vector<16x8xf32>
    %230 = tpu.matmul %229, %228, %cst_66 {dimension_numbers = #tpu.dot_dimension_numbers<[1], [0], [0], [1], [0, 0, 1, 1], [], []>} : vector<16x16xbf16>, vector<16x8xbf16>, vector<16x8xf32> -> vector<16x8xf32>
    %231 = tpu.reciprocal %227 {approx = true} : vector<16x1xf32> -> vector<16x1xf32>
    %232 = vector.broadcast %231 : vector<16x1xf32> to vector<16x8xf32>
    %233 = arith.mulf %230, %232 : vector<16x8xf32>
    %234 = vector.extract_strided_slice %7 {offsets = [0, 40], sizes = [1, 8], strides = [1, 1]} : vector<1x64xf32> to vector<1x8xf32>
    %235 = vector.broadcast %234 : vector<1x8xf32> to vector<16x8xf32>
    %236 = arith.addf %233, %235 : vector<16x8xf32>
    %cst_67 = arith.constant 0.000000e+00 : f32
    %237 = vector.broadcast %cst_67 : f32 to vector<16x8xf32>
    %238 = arith.cmpf ogt, %236, %237 : vector<16x8xf32>
    %cst_68 = arith.constant 0.000000e+00 : f32
    %239 = vector.broadcast %cst_68 : f32 to vector<16x8xf32>
    %240 = arith.minimumf %236, %239 : vector<16x8xf32>
    %241 = math.exp %240 : vector<16x8xf32>
    %cst_69 = arith.constant 1.000000e+00 : f32
    %242 = vector.broadcast %cst_69 : f32 to vector<16x8xf32>
    %243 = arith.subf %241, %242 : vector<16x8xf32>
    %244 = arith.select %238, %236, %243 : vector<16x8xi1>, vector<16x8xf32>
    %245 = arith.truncf %244 : vector<16x8xf32> to vector<16x8xbf16>
    %c40 = arith.constant 40 : index
    %c0_70 = arith.constant 0 : index
    %246 = vector.load %arg5[%c40, %c0_70] : memref<64x128xbf16, #tpu.memory_space<vmem>>, vector<8x128xbf16>
    %cst_71 = arith.constant dense<0.000000e+00> : vector<16x128xf32>
    %247 = tpu.matmul %245, %246, %cst_71 {dimension_numbers = #tpu.dot_dimension_numbers<[1], [0], [0], [1], [0, 0, 1, 1], [], []>} : vector<16x8xbf16>, vector<8x128xbf16>, vector<16x128xf32> -> vector<16x128xf32>
    %248 = arith.addf %208, %247 : vector<16x128xf32>
    %249 = vector.extract_strided_slice %6 {offsets = [0, 6], sizes = [16, 1], strides = [1, 1]} : vector<16x16xf32> to vector<16x1xf32>
    %250 = vector.extract_strided_slice %6 {offsets = [0, 14], sizes = [16, 1], strides = [1, 1]} : vector<16x16xf32> to vector<16x1xf32>
    %251 = tpu.transpose %249, [1, 0] : vector<16x1xf32> -> vector<1x16xf32>
    %252 = vector.broadcast %250 : vector<16x1xf32> to vector<16x16xf32>
    %253 = vector.broadcast %251 : vector<1x16xf32> to vector<16x16xf32>
    %254 = arith.addf %252, %253 : vector<16x16xf32>
    %cst_72 = arith.constant 0.000000e+00 : f32
    %255 = vector.broadcast %cst_72 : f32 to vector<16x16xf32>
    %256 = arith.cmpf ogt, %254, %255 : vector<16x16xf32>
    %cst_73 = arith.constant 2.000000e-01 : f32
    %257 = vector.broadcast %cst_73 : f32 to vector<16x16xf32>
    %258 = arith.mulf %257, %254 : vector<16x16xf32>
    %259 = arith.select %256, %254, %258 : vector<16x16xi1>, vector<16x16xf32>
    %260 = arith.addf %259, %1 : vector<16x16xf32>
    %cst_74 = arith.constant dense<0xFF800000> : vector<16xf32>
    %261 = vector.multi_reduction <maximumf>, %260, %cst_74 [1] : vector<16x16xf32> to vector<16xf32>
    %262 = vector.shape_cast %261 : vector<16xf32> to vector<16x1xf32>
    %263 = vector.broadcast %262 : vector<16x1xf32> to vector<16x16xf32>
    %264 = arith.subf %260, %263 : vector<16x16xf32>
    %265 = math.exp %264 : vector<16x16xf32>
    %cst_75 = arith.constant dense<0.000000e+00> : vector<16xf32>
    %266 = vector.multi_reduction <add>, %265, %cst_75 [1] : vector<16x16xf32> to vector<16xf32>
    %267 = vector.shape_cast %266 : vector<16xf32> to vector<16x1xf32>
    %268 = vector.extract_strided_slice %4 {offsets = [0, 48], sizes = [16, 8], strides = [1, 1]} : vector<16x64xbf16> to vector<16x8xbf16>
    %269 = arith.truncf %265 : vector<16x16xf32> to vector<16x16xbf16>
    %cst_76 = arith.constant dense<0.000000e+00> : vector<16x8xf32>
    %270 = tpu.matmul %269, %268, %cst_76 {dimension_numbers = #tpu.dot_dimension_numbers<[1], [0], [0], [1], [0, 0, 1, 1], [], []>} : vector<16x16xbf16>, vector<16x8xbf16>, vector<16x8xf32> -> vector<16x8xf32>
    %271 = tpu.reciprocal %267 {approx = true} : vector<16x1xf32> -> vector<16x1xf32>
    %272 = vector.broadcast %271 : vector<16x1xf32> to vector<16x8xf32>
    %273 = arith.mulf %270, %272 : vector<16x8xf32>
    %274 = vector.extract_strided_slice %7 {offsets = [0, 48], sizes = [1, 8], strides = [1, 1]} : vector<1x64xf32> to vector<1x8xf32>
    %275 = vector.broadcast %274 : vector<1x8xf32> to vector<16x8xf32>
    %276 = arith.addf %273, %275 : vector<16x8xf32>
    %cst_77 = arith.constant 0.000000e+00 : f32
    %277 = vector.broadcast %cst_77 : f32 to vector<16x8xf32>
    %278 = arith.cmpf ogt, %276, %277 : vector<16x8xf32>
    %cst_78 = arith.constant 0.000000e+00 : f32
    %279 = vector.broadcast %cst_78 : f32 to vector<16x8xf32>
    %280 = arith.minimumf %276, %279 : vector<16x8xf32>
    %281 = math.exp %280 : vector<16x8xf32>
    %cst_79 = arith.constant 1.000000e+00 : f32
    %282 = vector.broadcast %cst_79 : f32 to vector<16x8xf32>
    %283 = arith.subf %281, %282 : vector<16x8xf32>
    %284 = arith.select %278, %276, %283 : vector<16x8xi1>, vector<16x8xf32>
    %285 = arith.truncf %284 : vector<16x8xf32> to vector<16x8xbf16>
    %c48 = arith.constant 48 : index
    %c0_80 = arith.constant 0 : index
    %286 = vector.load %arg5[%c48, %c0_80] : memref<64x128xbf16, #tpu.memory_space<vmem>>, vector<8x128xbf16>
    %cst_81 = arith.constant dense<0.000000e+00> : vector<16x128xf32>
    %287 = tpu.matmul %285, %286, %cst_81 {dimension_numbers = #tpu.dot_dimension_numbers<[1], [0], [0], [1], [0, 0, 1, 1], [], []>} : vector<16x8xbf16>, vector<8x128xbf16>, vector<16x128xf32> -> vector<16x128xf32>
    %288 = arith.addf %248, %287 : vector<16x128xf32>
    %289 = vector.extract_strided_slice %6 {offsets = [0, 7], sizes = [16, 1], strides = [1, 1]} : vector<16x16xf32> to vector<16x1xf32>
    %290 = vector.extract_strided_slice %6 {offsets = [0, 15], sizes = [16, 1], strides = [1, 1]} : vector<16x16xf32> to vector<16x1xf32>
    %291 = tpu.transpose %289, [1, 0] : vector<16x1xf32> -> vector<1x16xf32>
    %292 = vector.broadcast %290 : vector<16x1xf32> to vector<16x16xf32>
    %293 = vector.broadcast %291 : vector<1x16xf32> to vector<16x16xf32>
    %294 = arith.addf %292, %293 : vector<16x16xf32>
    %cst_82 = arith.constant 0.000000e+00 : f32
    %295 = vector.broadcast %cst_82 : f32 to vector<16x16xf32>
    %296 = arith.cmpf ogt, %294, %295 : vector<16x16xf32>
    %cst_83 = arith.constant 2.000000e-01 : f32
    %297 = vector.broadcast %cst_83 : f32 to vector<16x16xf32>
    %298 = arith.mulf %297, %294 : vector<16x16xf32>
    %299 = arith.select %296, %294, %298 : vector<16x16xi1>, vector<16x16xf32>
    %300 = arith.addf %299, %1 : vector<16x16xf32>
    %cst_84 = arith.constant dense<0xFF800000> : vector<16xf32>
    %301 = vector.multi_reduction <maximumf>, %300, %cst_84 [1] : vector<16x16xf32> to vector<16xf32>
    %302 = vector.shape_cast %301 : vector<16xf32> to vector<16x1xf32>
    %303 = vector.broadcast %302 : vector<16x1xf32> to vector<16x16xf32>
    %304 = arith.subf %300, %303 : vector<16x16xf32>
    %305 = math.exp %304 : vector<16x16xf32>
    %cst_85 = arith.constant dense<0.000000e+00> : vector<16xf32>
    %306 = vector.multi_reduction <add>, %305, %cst_85 [1] : vector<16x16xf32> to vector<16xf32>
    %307 = vector.shape_cast %306 : vector<16xf32> to vector<16x1xf32>
    %308 = vector.extract_strided_slice %4 {offsets = [0, 56], sizes = [16, 8], strides = [1, 1]} : vector<16x64xbf16> to vector<16x8xbf16>
    %309 = arith.truncf %305 : vector<16x16xf32> to vector<16x16xbf16>
    %cst_86 = arith.constant dense<0.000000e+00> : vector<16x8xf32>
    %310 = tpu.matmul %309, %308, %cst_86 {dimension_numbers = #tpu.dot_dimension_numbers<[1], [0], [0], [1], [0, 0, 1, 1], [], []>} : vector<16x16xbf16>, vector<16x8xbf16>, vector<16x8xf32> -> vector<16x8xf32>
    %311 = tpu.reciprocal %307 {approx = true} : vector<16x1xf32> -> vector<16x1xf32>
    %312 = vector.broadcast %311 : vector<16x1xf32> to vector<16x8xf32>
    %313 = arith.mulf %310, %312 : vector<16x8xf32>
    %314 = vector.extract_strided_slice %7 {offsets = [0, 56], sizes = [1, 8], strides = [1, 1]} : vector<1x64xf32> to vector<1x8xf32>
    %315 = vector.broadcast %314 : vector<1x8xf32> to vector<16x8xf32>
    %316 = arith.addf %313, %315 : vector<16x8xf32>
    %cst_87 = arith.constant 0.000000e+00 : f32
    %317 = vector.broadcast %cst_87 : f32 to vector<16x8xf32>
    %318 = arith.cmpf ogt, %316, %317 : vector<16x8xf32>
    %cst_88 = arith.constant 0.000000e+00 : f32
    %319 = vector.broadcast %cst_88 : f32 to vector<16x8xf32>
    %320 = arith.minimumf %316, %319 : vector<16x8xf32>
    %321 = math.exp %320 : vector<16x8xf32>
    %cst_89 = arith.constant 1.000000e+00 : f32
    %322 = vector.broadcast %cst_89 : f32 to vector<16x8xf32>
    %323 = arith.subf %321, %322 : vector<16x8xf32>
    %324 = arith.select %318, %316, %323 : vector<16x8xi1>, vector<16x8xf32>
    %325 = arith.truncf %324 : vector<16x8xf32> to vector<16x8xbf16>
    %c56 = arith.constant 56 : index
    %c0_90 = arith.constant 0 : index
    %326 = vector.load %arg5[%c56, %c0_90] : memref<64x128xbf16, #tpu.memory_space<vmem>>, vector<8x128xbf16>
    %cst_91 = arith.constant dense<0.000000e+00> : vector<16x128xf32>
    %327 = tpu.matmul %325, %326, %cst_91 {dimension_numbers = #tpu.dot_dimension_numbers<[1], [0], [0], [1], [0, 0, 1, 1], [], []>} : vector<16x8xbf16>, vector<8x128xbf16>, vector<16x128xf32> -> vector<16x128xf32>
    %328 = arith.addf %288, %327 : vector<16x128xf32>
    %c0_92 = arith.constant 0 : index
    %c0_93 = arith.constant 0 : index
    %329 = vector.load %arg6[%c0_92, %c0_93] : memref<3x128xf32, #tpu.memory_space<vmem>>, vector<3x128xf32>
    %330 = vector.extract_strided_slice %329 {offsets = [0, 0], sizes = [1, 128], strides = [1, 1]} : vector<3x128xf32> to vector<1x128xf32>
    %331 = vector.broadcast %330 : vector<1x128xf32> to vector<16x128xf32>
    %332 = arith.mulf %328, %331 : vector<16x128xf32>
    %cst_94 = arith.constant dense<0.000000e+00> : vector<16xf32>
    %333 = vector.multi_reduction <add>, %332, %cst_94 [1] : vector<16x128xf32> to vector<16xf32>
    %334 = vector.shape_cast %333 : vector<16xf32> to vector<16x1xf32>
    %335 = vector.extract_strided_slice %329 {offsets = [1, 0], sizes = [1, 128], strides = [1, 1]} : vector<3x128xf32> to vector<1x128xf32>
    %336 = vector.broadcast %335 : vector<1x128xf32> to vector<16x128xf32>
    %337 = arith.mulf %328, %336 : vector<16x128xf32>
    %cst_95 = arith.constant dense<0.000000e+00> : vector<16xf32>
    %338 = vector.multi_reduction <add>, %337, %cst_95 [1] : vector<16x128xf32> to vector<16xf32>
    %339 = vector.shape_cast %338 : vector<16xf32> to vector<16x1xf32>
    %340 = tpu.transpose %334, [1, 0] : vector<16x1xf32> -> vector<1x16xf32>
    %341 = vector.broadcast %339 : vector<16x1xf32> to vector<16x16xf32>
    %342 = vector.broadcast %340 : vector<1x16xf32> to vector<16x16xf32>
    %343 = arith.addf %341, %342 : vector<16x16xf32>
    %cst_96 = arith.constant 0.000000e+00 : f32
    %344 = vector.broadcast %cst_96 : f32 to vector<16x16xf32>
    %345 = arith.cmpf ogt, %343, %344 : vector<16x16xf32>
    %cst_97 = arith.constant 2.000000e-01 : f32
    %346 = vector.broadcast %cst_97 : f32 to vector<16x16xf32>
    %347 = arith.mulf %346, %343 : vector<16x16xf32>
    %348 = arith.select %345, %343, %347 : vector<16x16xi1>, vector<16x16xf32>
    %349 = arith.addf %348, %1 : vector<16x16xf32>
    %cst_98 = arith.constant dense<0xFF800000> : vector<16xf32>
    %350 = vector.multi_reduction <maximumf>, %349, %cst_98 [1] : vector<16x16xf32> to vector<16xf32>
    %351 = vector.shape_cast %350 : vector<16xf32> to vector<16x1xf32>
    %352 = vector.broadcast %351 : vector<16x1xf32> to vector<16x16xf32>
    %353 = arith.subf %349, %352 : vector<16x16xf32>
    %354 = math.exp %353 : vector<16x16xf32>
    %cst_99 = arith.constant dense<0.000000e+00> : vector<16xf32>
    %355 = vector.multi_reduction <add>, %354, %cst_99 [1] : vector<16x16xf32> to vector<16xf32>
    %356 = vector.shape_cast %355 : vector<16xf32> to vector<16x1xf32>
    %357 = arith.truncf %354 : vector<16x16xf32> to vector<16x16xbf16>
    %358 = arith.truncf %328 : vector<16x128xf32> to vector<16x128xbf16>
    %cst_100 = arith.constant dense<0.000000e+00> : vector<16x128xf32>
    %359 = tpu.matmul %357, %358, %cst_100 {dimension_numbers = #tpu.dot_dimension_numbers<[1], [0], [0], [1], [0, 0, 1, 1], [], []>} : vector<16x16xbf16>, vector<16x128xbf16>, vector<16x128xf32> -> vector<16x128xf32>
    %360 = tpu.reciprocal %356 {approx = true} : vector<16x1xf32> -> vector<16x1xf32>
    %361 = vector.broadcast %360 : vector<16x1xf32> to vector<16x128xf32>
    %362 = arith.mulf %359, %361 : vector<16x128xf32>
    %363 = vector.extract_strided_slice %329 {offsets = [2, 0], sizes = [1, 128], strides = [1, 1]} : vector<3x128xf32> to vector<1x128xf32>
    %364 = vector.broadcast %363 : vector<1x128xf32> to vector<16x128xf32>
    %365 = arith.addf %362, %364 : vector<16x128xf32>
    %c0_101 = arith.constant 0 : index
    %c0_102 = arith.constant 0 : index
    %366 = vector.load %arg7[%c0_101, %c0_102] : memref<16x128xf32, #tpu.memory_space<vmem>>, vector<16x128xf32>
    tpu.vector_store %arg7[%c0_101, %c0_102], %365 {strides = array<i32>} : memref<16x128xf32, #tpu.memory_space<vmem>>, vector<16x128xf32>,
    return
  }
}

</mosaic_0001>

<llo_original>
// kernel: gat_forward.1
$region0: #{gat_forward.1}
  #allocation0 [shape = 'u32[]', space=smem, size = 0x4, offset = 0x4, fixed_abs, tag = 'smem constant byte address 0x4 - core index']
  #allocation1 [shape = 'u32[144,128]{1,0:T(1,128)}', space=vmem, size = 0x12000, scoped, tag = 'internal scratch']
  %s0 = inlined_call_operand.vmem [shape: bf16[16,32], index: 0, kind: input, shape index: {}]
  %s1 = inlined_call_operand.vmem [shape: f32[16,16], index: 1, kind: input, shape index: {}]
  %s2 = inlined_call_operand.vmem [shape: bf16[32,64], index: 2, kind: input, shape index: {}]
  %s3 = inlined_call_operand.vmem [shape: bf16[64,16], index: 3, kind: input, shape index: {}]
  %s4 = inlined_call_operand.vmem [shape: f32[1,64], index: 4, kind: input, shape index: {}]
  %s5 = inlined_call_operand.vmem [shape: bf16[64,128], index: 5, kind: input, shape index: {}]
  %s6 = inlined_call_operand.vmem [shape: f32[3,128], index: 6, kind: input, shape index: {}]
  %s7 = inlined_call_operand.vmem [shape: f32[16,128], index: 7, kind: output, shape index: {}]
  %s8 = sld [smem:[#allocation0]]
  $region38: #{gat_forward.1} parent=0
    _
  %s10 = ssub.s32 1, %s8
  %s11 = scalar_select 0, %s10, %s8
  // Predicated region
  $region2: #{gat_forward.1} parent=0 // pred_check
    _
  $region3: #{gat_forward.1} parent=0 // pred_check_branch
    %13 = sbr.rel (0) target = $region5
  $region4: #{gat_forward.1} parent=0 // pred_region
    _
  $region5: #{gat_forward.1} parent=0 // pred_fallthru
    _
  // Predicated region
  $region6: #{gat_forward.1} parent=0 // pred_check
    _
  $region7: #{gat_forward.1} parent=0 // pred_check_branch
    %15 = sbr.rel (0) target = $region9
  $region8: #{gat_forward.1} parent=0 // pred_region
    _
  $region9: #{gat_forward.1} parent=0 // pred_fallthru
    _
  // Predicated region
  $region10: #{gat_forward.1} parent=0 // pred_check
    _
  $region11: #{gat_forward.1} parent=0 // pred_check_branch
    %17 = sbr.rel (0) target = $region13
  $region12: #{gat_forward.1} parent=0 // pred_region
    _
  $region13: #{gat_forward.1} parent=0 // pred_fallthru
    _
  // Predicated region
  $region14: #{gat_forward.1} parent=0 // pred_check
    _
  $region15: #{gat_forward.1} parent=0 // pred_check_branch
    %19 = sbr.rel (0) target = $region17
  $region16: #{gat_forward.1} parent=0 // pred_region
    _
  $region17: #{gat_forward.1} parent=0 // pred_fallthru
    _
  // Predicated region
  $region18: #{gat_forward.1} parent=0 // pred_check
    _
  $region19: #{gat_forward.1} parent=0 // pred_check_branch
    %21 = sbr.rel (0) target = $region21
  $region20: #{gat_forward.1} parent=0 // pred_region
    _
  $region21: #{gat_forward.1} parent=0 // pred_fallthru
    _
  // Predicated region
  $region22: #{gat_forward.1} parent=0 // pred_check
    _
  $region23: #{gat_forward.1} parent=0 // pred_check_branch
    %23 = sbr.rel (0) target = $region25
  $region24: #{gat_forward.1} parent=0 // pred_region
    _
  $region25: #{gat_forward.1} parent=0 // pred_fallthru
    _
  // Predicated region
  $region26: #{gat_forward.1} parent=0 // pred_check
    _
  $region27: #{gat_forward.1} parent=0 // pred_check_branch
    %25 = sbr.rel (0) target = $region29
  $region28: #{gat_forward.1} parent=0 // pred_region
    _
  $region29: #{gat_forward.1} parent=0 // pred_fallthru
    _
  %v27 = vld [vmem:[%s0] sm:$0xf]
  %v28 = vld [vmem:[%s0 + $0x4] sm:$0xf]
  %v29 = vld [vmem:[%s1] sm:$0xff]
  %v30 = vld [vmem:[%s1 + $0x8] sm:$0xff]
  %v31 = vld [vmem:[%s2] sm:$0xf]
  %v32 = vld [vmem:[%s2 + $0x4] sm:$0xf]
  %v33 = vld [vmem:[%s2 + $0x8] sm:$0xf]
  %v34 = vld [vmem:[%s2 + $0xc] sm:$0xf]
  %v37 = vunpack.c.l.b16 %v27
  %v38 = vunpack.c.l.b16 %v28
  %v39 = vpack.c.b16 %v38, %v37
  %v44 = vunpack.c.l.b16 %v31
  %v45 = vunpack.c.l.b16 %v32
  %v46 = vunpack.c.l.b16 %v33
  %v47 = vunpack.c.l.b16 %v34
  %v48 = vpack.c.b16 %v45, %v44
  %v49 = vpack.c.b16 %v47, %v46
  %vm52 = vcmask 261120
  %v54 = vsel %vm52, %v39, 0
  %56 = vmatprep.subr.bf16.mxu0 0
  %57 = vmatpush1.bf16.msra.mxu0 %v48
  %58 = vmatprep.subr.bf16.mxu0 0
  %59 = vmatpush1.bf16.msra.mxu0 %v49
  %60 = vmatprep.subr.bf16.mxu0 0
  %61 = vmatpush1.bf16.msra.mxu0 0
  %62 = vmatprep.subr.bf16.mxu0 0
  %63 = vmatpush1.bf16.msra.mxu0 0
  %64 = vmatprep.subr.bf16.mxu0 0
  %65 = vmatpush1.bf16.msra.mxu0 0
  %66 = vmatprep.subr.bf16.mxu0 0
  %67 = vmatpush1.bf16.msra.mxu0 0
  %68 = vmatprep.subr.bf16.mxu0 0
  %69 = vmatpush1.bf16.msra.mxu0 0
  %70 = vmatprep.subr.bf16.mxu0 0
  %71 = vmatpush1.bf16.msra.mxu0 0
  %72 = vmatprep.subr.bf16.mxu0 0
  %73 = vmatpush1.bf16.msra.mxu0 0
  %74 = vmatprep.subr.bf16.mxu0 0
  %75 = vmatpush1.bf16.msra.mxu0 0
  %76 = vmatprep.subr.bf16.mxu0 0
  %77 = vmatpush1.bf16.msra.mxu0 0
  %78 = vmatprep.subr.bf16.mxu0 0
  %79 = vmatpush1.bf16.msra.mxu0 0
  %80 = vmatprep.subr.bf16.mxu0 0
  %81 = vmatpush1.bf16.msra.mxu0 0
  %82 = vmatprep.subr.bf16.mxu0 0
  %83 = vmatpush1.bf16.msra.mxu0 0
  %84 = vmatprep.subr.bf16.mxu0 0
  %85 = vmatpush1.bf16.msra.mxu0 0
  %86 = vmatprep.subr.bf16.mxu0 0
  %87 = vmatpush1.bf16.msra.mxu0 0
  %88 = vmatprep.mubr.bf16.mxu0 0
  %89 = vmatmul.mubr.bf16.gmra.mrb[0].mxu0 %v54
  %v90 = vpop.f32.mrb[0].mxu0
  %v91 = vadd.f32 0.0, %v90
  %v92 = vpop.f32.mrb[0].mxu0
  %v93 = vpop.f32.mrb[0].mxu0
  %v94 = vadd.f32 0.0, %v93
  %v95 = vpop.f32.mrb[0].mxu0
  %96 = vdwg.mxu0
  %v97 = vpack.c.bf16 %v94, %v91
  %v98 = vld [vmem:[%s3] sm:$0xf]
  %v99 = vld [vmem:[%s3 + $0x4] sm:$0xf]
  %v100 = vld [vmem:[%s3 + $0x8] sm:$0xf]
  %v101 = vld [vmem:[%s3 + $0xc] sm:$0xf]
  %v102 = vld [vmem:[%s3 + $0x10] sm:$0xf]
  %v103 = vld [vmem:[%s3 + $0x14] sm:$0xf]
  %v104 = vld [vmem:[%s3 + $0x18] sm:$0xf]
  %v105 = vld [vmem:[%s3 + $0x1c] sm:$0xf]
  %v114 = vunpack.c.l.b16 %v98
  %v115 = vunpack.c.l.b16 %v99
  %v116 = vunpack.c.l.b16 %v100
  %v117 = vunpack.c.l.b16 %v101
  %v118 = vunpack.c.l.b16 %v102
  %v119 = vunpack.c.l.b16 %v103
  %v120 = vunpack.c.l.b16 %v104
  %v121 = vunpack.c.l.b16 %v105
  %v122 = vpack.c.b16 %v115, %v114
  %v123 = vpack.c.b16 %v117, %v116
  %v124 = vpack.c.b16 %v119, %v118
  %v125 = vpack.c.b16 %v121, %v120
  %vm130 = vcmask 523264
  %v132 = vsel %vm130, %v97, 0
  %134 = vmatprep.subr.bf16.mxu0 0
  %135 = vmatpush1.bf16.msra.mxu0 %v122
  %136 = vmatprep.subr.bf16.mxu0 0
  %137 = vmatpush1.bf16.msra.mxu0 %v123
  %138 = vmatprep.subr.bf16.mxu0 0
  %139 = vmatpush1.bf16.msra.mxu0 %v124
  %140 = vmatprep.subr.bf16.mxu0 0
  %141 = vmatpush1.bf16.msra.mxu0 %v125
  %142 = vmatprep.subr.bf16.mxu0 0
  %143 = vmatpush1.bf16.msra.mxu0 0
  %144 = vmatprep.subr.bf16.mxu0 0
  %145 = vmatpush1.bf16.msra.mxu0 0
  %146 = vmatprep.subr.bf16.mxu0 0
  %147 = vmatpush1.bf16.msra.mxu0 0
  %148 = vmatprep.subr.bf16.mxu0 0
  %149 = vmatpush1.bf16.msra.mxu0 0
  %150 = vmatprep.subr.bf16.mxu0 0
  %151 = vmatpush1.bf16.msra.mxu0 0
  %152 = vmatprep.subr.bf16.mxu0 0
  %153 = vmatpush1.bf16.msra.mxu0 0
  %154 = vmatprep.subr.bf16.mxu0 0
  %155 = vmatpush1.bf16.msra.mxu0 0
  %156 = vmatprep.subr.bf16.mxu0 0
  %157 = vmatpush1.bf16.msra.mxu0 0
  %158 = vmatprep.subr.bf16.mxu0 0
  %159 = vmatpush1.bf16.msra.mxu0 0
  %160 = vmatprep.subr.bf16.mxu0 0
  %161 = vmatpush1.bf16.msra.mxu0 0
  %162 = vmatprep.subr.bf16.mxu0 0
  %163 = vmatpush1.bf16.msra.mxu0 0
  %164 = vmatprep.subr.bf16.mxu0 0
  %165 = vmatpush1.bf16.msra.mxu0 0
  %166 = vmatprep.mubr.bf16.mxu0 0
  %167 = vmatmul.mubr.bf16.gmra.mrb[0].mxu0 %v132
  %v168 = vpop.f32.mrb[0].mxu0
  %v169 = vadd.f32 0.0, %v168
  %v170 = vpop.f32.mrb[0].mxu0
  %v171 = vpop.f32.mrb[0].mxu0
  %v172 = vadd.f32 0.0, %v171
  %v173 = vpop.f32.mrb[0].mxu0
  %174 = vdwg.mxu0
  %v175 = vld [vmem:[%s4] sm:$0x1]
  %176 = vxpose.xlu0.b32.start [1/16] %v169, 128
  %177 = vxpose.xlu0.b32.cont [2/16] %v172, 128
  %178 = vxpose.xlu0.b32.cont [3/16] 0.0, 128
  %179 = vxpose.xlu0.b32.cont [4/16] 0.0, 128
  %180 = vxpose.xlu0.b32.cont [5/16] 0.0, 128
  %181 = vxpose.xlu0.b32.cont [6/16] 0.0, 128
  %182 = vxpose.xlu0.b32.cont [7/16] 0.0, 128
  %183 = vxpose.xlu0.b32.cont [8/16] 0.0, 128
  %184 = vxpose.xlu0.b32.cont [9/16] 0.0, 128
  %185 = vxpose.xlu0.b32.cont [10/16] 0.0, 128
  %186 = vxpose.xlu0.b32.cont [11/16] 0.0, 128
  %187 = vxpose.xlu0.b32.cont [12/16] 0.0, 128
  %188 = vxpose.xlu0.b32.cont [13/16] 0.0, 128
  %189 = vxpose.xlu0.b32.cont [14/16] 0.0, 128
  %190 = vxpose.xlu0.b32.cont [15/16] 0.0, 128
  %191 = vxpose.xlu0.b32.end [16/16] 0.0, 128
  %v192 = vpop.trf.xlu0
  %v193 = vpop.trf.xlu0
  %v194 = vpop.trf.xlu0
  %v195 = vpop.trf.xlu0
  %v196 = vpop.trf.xlu0
  %v197 = vpop.trf.xlu0
  %v198 = vpop.trf.xlu0
  %v199 = vpop.trf.xlu0
  %v200 = vpop.trf.xlu0
  %v201 = vpop.trf.xlu0
  %v202 = vpop.trf.xlu0
  %v203 = vpop.trf.xlu0
  %v204 = vpop.trf.xlu0
  %v205 = vpop.trf.xlu0
  %v206 = vpop.trf.xlu0
  %v207 = vpop.trf.xlu0
  %209 = vset.pattern.permute.xlu0 8
  %210 = vperm.xlu0 %209, %v169
  %v211 = vpop.permute.xlu0 %210
  %214 = vset.pattern.permute.xlu0 8
  %215 = vperm.xlu0 %214, %v172
  %v216 = vpop.permute.xlu0 %215
  %v218 = vlaneseq
  %v219 = vshrl.u32 %v218, 7
  %v220 = vsub.s32 0, %v219
  %v221 = vrot.slane %v192, %v220
  %v222 = vadd.f32 %v211, %v221
  %v223 = vadd.f32 %v216, %v221
  %vm224 = vcmp.gt.f32.partialorder %v222, 0.0
  %vm225 = vcmp.gt.f32.partialorder %v223, 0.0
  %v226 = vmul.f32 %v222, 0.2
  %v227 = vmul.f32 %v223, 0.2
  %v228 = vsel %vm224, %v222, %v226
  %v229 = vsel %vm225, %v223, %v227
  %v230 = vadd.f32 %v228, %v29
  %v231 = vadd.f32 %v229, %v30
  %vm232 = vcmask 130048
  %v233 = vsel %vm232, %v230, -inf
  %234 = vmax.xlane.f32.xlu0 %v233
  %v235 = vpop.xlane.xlu0 %234
  %v236 = vsel %vm232, %v231, -inf
  %237 = vmax.xlane.f32.xlu0 %v236
  %v238 = vpop.xlane.xlu0 %237
  %v239 = vsub.f32 %v230, %v235
  %v240 = vsub.f32 %v231, %v238
  %v241 = vmul.f32 %v239, 1.442695
  %v242 = vpow.pop %v241
  %v243 = vmul.f32 %v240, 1.442695
  %v244 = vpow.pop %v243
  %v245 = vsel %vm232, %v242, 0.0
  %246 = vadd.xlane.f32.xlu0 %v245
  %v247 = vpop.xlane.xlu0 %246
  %v248 = vsel %vm232, %v244, 0.0
  %249 = vadd.xlane.f32.xlu0 %v248
  %v250 = vpop.xlane.xlu0 %249
  %v251 = vpack.c.bf16 %v244, %v242
  %v253 = vsel %vm232, %v251, 0
  %255 = vmatprep.subr.bf16.mxu0 0
  %256 = vmatpush1.bf16.msra.mxu0 %v97
  %257 = vmatprep.subr.bf16.mxu0 0
  %258 = vmatpush1.bf16.msra.mxu0 0
  %259 = vmatprep.subr.bf16.mxu0 0
  %260 = vmatpush1.bf16.msra.mxu0 0
  %261 = vmatprep.subr.bf16.mxu0 0
  %262 = vmatpush1.bf16.msra.mxu0 0
  %263 = vmatprep.subr.bf16.mxu0 0
  %264 = vmatpush1.bf16.msra.mxu0 0
  %265 = vmatprep.subr.bf16.mxu0 0
  %266 = vmatpush1.bf16.msra.mxu0 0
  %267 = vmatprep.subr.bf16.mxu0 0
  %268 = vmatpush1.bf16.msra.mxu0 0
  %269 = vmatprep.subr.bf16.mxu0 0
  %270 = vmatpush1.bf16.msra.mxu0 0
  %271 = vmatprep.subr.bf16.mxu0 0
  %272 = vmatpush1.bf16.msra.mxu0 0
  %273 = vmatprep.subr.bf16.mxu0 0
  %274 = vmatpush1.bf16.msra.mxu0 0
  %275 = vmatprep.subr.bf16.mxu0 0
  %276 = vmatpush1.bf16.msra.mxu0 0
  %277 = vmatprep.subr.bf16.mxu0 0
  %278 = vmatpush1.bf16.msra.mxu0 0
  %279 = vmatprep.subr.bf16.mxu0 0
  %280 = vmatpush1.bf16.msra.mxu0 0
  %281 = vmatprep.subr.bf16.mxu0 0
  %282 = vmatpush1.bf16.msra.mxu0 0
  %283 = vmatprep.subr.bf16.mxu0 0
  %284 = vmatpush1.bf16.msra.mxu0 0
  %285 = vmatprep.subr.bf16.mxu0 0
  %286 = vmatpush1.bf16.msra.mxu0 0
  %287 = vmatprep.mubr.bf16.mxu0 0
  %288 = vmatmul.mubr.bf16.gmra.mrb[0].mxu0 %v253
  %v289 = vpop.f32.mrb[0].mxu0
  %v290 = vadd.f32 0.0, %v289
  %v291 = vpop.f32.mrb[0].mxu0
  %v292 = vpop.f32.mrb[0].mxu0
  %v293 = vadd.f32 0.0, %v292
  %v294 = vpop.f32.mrb[0].mxu0
  %295 = vdwg.mxu0
  %v296 = vrcp.pop %v247
  %v297 = vrcp.pop %v250
  %v298 = vmul.f32 %v290, %v296
  %v299 = vmul.f32 %v293, %v297
  %v301 = vlaneseq
  %v302 = vshrl.u32 %v301, 7
  %v303 = vsub.s32 0, %v302
  %v304 = vrot.slane %v175, %v303
  %v306 = vadd.f32 %v298, %v304
  %v307 = vadd.f32 %v299, %v304
  %vm308 = vcmp.gt.f32.partialorder %v306, 0.0
  %vm309 = vcmp.gt.f32.partialorder %v307, 0.0
  %v310 = vmin.f32 %v306, 0.0
  %v311 = vmin.f32 %v307, 0.0
  %v312 = vmul.f32 %v310, 1.442695
  %v313 = vpow.pop %v312
  %v314 = vmul.f32 %v311, 1.442695
  %v315 = vpow.pop %v314
  %v316 = vsub.f32 %v313, 1.0
  %v317 = vsub.f32 %v315, 1.0
  %v318 = vsel %vm308, %v306, %v316
  %v319 = vsel %vm309, %v307, %v317
  %v320 = vpack.c.bf16 %v319, %v318
  %v321 = vld [vmem:[%s5] sm:$0xf]
  %322 = vrot.lane.b32.xlu0 %v169, 127
  %v323 = vpop.permute.xlu0 %322
  %324 = vrot.lane.b32.xlu0 %v172, 127
  %v325 = vpop.permute.xlu0 %324
  %328 = vxpose.xlu0.b32.start [1/16] %v323, 128
  %329 = vxpose.xlu0.b32.cont [2/16] %v325, 128
  %330 = vxpose.xlu0.b32.cont [3/16] 0.0, 128
  %331 = vxpose.xlu0.b32.cont [4/16] 0.0, 128
  %332 = vxpose.xlu0.b32.cont [5/16] 0.0, 128
  %333 = vxpose.xlu0.b32.cont [6/16] 0.0, 128
  %334 = vxpose.xlu0.b32.cont [7/16] 0.0, 128
  %335 = vxpose.xlu0.b32.cont [8/16] 0.0, 128
  %336 = vxpose.xlu0.b32.cont [9/16] 0.0, 128
  %337 = vxpose.xlu0.b32.cont [10/16] 0.0, 128
  %338 = vxpose.xlu0.b32.cont [11/16] 0.0, 128
  %339 = vxpose.xlu0.b32.cont [12/16] 0.0, 128
  %340 = vxpose.xlu0.b32.cont [13/16] 0.0, 128
  %341 = vxpose.xlu0.b32.cont [14/16] 0.0, 128
  %342 = vxpose.xlu0.b32.cont [15/16] 0.0, 128
  %343 = vxpose.xlu0.b32.end [16/16] 0.0, 128
  %v344 = vpop.trf.xlu0
  %v345 = vpop.trf.xlu0
  %v346 = vpop.trf.xlu0
  %v347 = vpop.trf.xlu0
  %v348 = vpop.trf.xlu0
  %v349 = vpop.trf.xlu0
  %v350 = vpop.trf.xlu0
  %v351 = vpop.trf.xlu0
  %v352 = vpop.trf.xlu0
  %v353 = vpop.trf.xlu0
  %v354 = vpop.trf.xlu0
  %v355 = vpop.trf.xlu0
  %v356 = vpop.trf.xlu0
  %v357 = vpop.trf.xlu0
  %v358 = vpop.trf.xlu0
  %v359 = vpop.trf.xlu0
  %360 = vset.pattern.permute.xlu0 9
  %361 = vperm.xlu0 %360, %v169
  %v362 = vpop.permute.xlu0 %361
  %364 = vset.pattern.permute.xlu0 9
  %365 = vperm.xlu0 %364, %v172
  %v366 = vpop.permute.xlu0 %365
  %v368 = vlaneseq
  %v369 = vshrl.u32 %v368, 7
  %v370 = vsub.s32 0, %v369
  %v371 = vrot.slane %v344, %v370
  %v372 = vadd.f32 %v362, %v371
  %v373 = vadd.f32 %v366, %v371
  %vm374 = vcmp.gt.f32.partialorder %v372, 0.0
  %vm375 = vcmp.gt.f32.partialorder %v373, 0.0
  %v376 = vmul.f32 %v372, 0.2
  %v377 = vmul.f32 %v373, 0.2
  %v378 = vsel %vm374, %v372, %v376
  %v379 = vsel %vm375, %v373, %v377
  %v380 = vadd.f32 %v378, %v29
  %v381 = vadd.f32 %v379, %v30
  %v382 = vsel %vm232, %v380, -inf
  %383 = vmax.xlane.f32.xlu0 %v382
  %v384 = vpop.xlane.xlu0 %383
  %v385 = vsel %vm232, %v381, -inf
  %386 = vmax.xlane.f32.xlu0 %v385
  %v387 = vpop.xlane.xlu0 %386
  %v388 = vsub.f32 %v380, %v384
  %v389 = vsub.f32 %v381, %v387
  %v390 = vmul.f32 %v388, 1.442695
  %v391 = vpow.pop %v390
  %v392 = vmul.f32 %v389, 1.442695
  %v393 = vpow.pop %v392
  %v394 = vsel %vm232, %v391, 0.0
  %395 = vadd.xlane.f32.xlu0 %v394
  %v396 = vpop.xlane.xlu0 %395
  %v397 = vsel %vm232, %v393, 0.0
  %398 = vadd.xlane.f32.xlu0 %v397
  %v399 = vpop.xlane.xlu0 %398
  %v400 = vpack.c.bf16 %v393, %v391
  %402 = vrot.lane.b32.xlu0 %v97, 120
  %v403 = vpop.permute.xlu0 %402
  %v406 = vsel %vm232, %v400, 0
  %408 = vmatprep.subr.bf16.mxu0 0
  %409 = vmatpush1.bf16.msra.mxu0 %v403
  %410 = vmatprep.subr.bf16.mxu0 0
  %411 = vmatpush1.bf16.msra.mxu0 0
  %412 = vmatprep.subr.bf16.mxu0 0
  %413 = vmatpush1.bf16.msra.mxu0 0
  %414 = vmatprep.subr.bf16.mxu0 0
  %415 = vmatpush1.bf16.msra.mxu0 0
  %416 = vmatprep.subr.bf16.mxu0 0
  %417 = vmatpush1.bf16.msra.mxu0 0
  %418 = vmatprep.subr.bf16.mxu0 0
  %419 = vmatpush1.bf16.msra.mxu0 0
  %420 = vmatprep.subr.bf16.mxu0 0
  %421 = vmatpush1.bf16.msra.mxu0 0
  %422 = vmatprep.subr.bf16.mxu0 0
  %423 = vmatpush1.bf16.msra.mxu0 0
  %424 = vmatprep.subr.bf16.mxu0 0
  %425 = vmatpush1.bf16.msra.mxu0 0
  %426 = vmatprep.subr.bf16.mxu0 0
  %427 = vmatpush1.bf16.msra.mxu0 0
  %428 = vmatprep.subr.bf16.mxu0 0
  %429 = vmatpush1.bf16.msra.mxu0 0
  %430 = vmatprep.subr.bf16.mxu0 0
  %431 = vmatpush1.bf16.msra.mxu0 0
  %432 = vmatprep.subr.bf16.mxu0 0
  %433 = vmatpush1.bf16.msra.mxu0 0
  %434 = vmatprep.subr.bf16.mxu0 0
  %435 = vmatpush1.bf16.msra.mxu0 0
  %436 = vmatprep.subr.bf16.mxu0 0
  %437 = vmatpush1.bf16.msra.mxu0 0
  %438 = vmatprep.subr.bf16.mxu0 0
  %439 = vmatpush1.bf16.msra.mxu0 0
  %440 = vmatprep.mubr.bf16.mxu0 0
  %441 = vmatmul.mubr.bf16.gmra.mrb[0].mxu0 %v406
  %v442 = vpop.f32.mrb[0].mxu0
  %v443 = vadd.f32 0.0, %v442
  %v444 = vpop.f32.mrb[0].mxu0
  %v445 = vpop.f32.mrb[0].mxu0
  %v446 = vadd.f32 0.0, %v445
  %v447 = vpop.f32.mrb[0].mxu0
  %448 = vdwg.mxu0
  %v449 = vrcp.pop %v396
  %v450 = vrcp.pop %v399
  %v451 = vmul.f32 %v443, %v449
  %v452 = vmul.f32 %v446, %v450
  %453 = vrot.lane.b32.xlu0 %v304, 120
  %v454 = vpop.permute.xlu0 %453
  %v456 = vadd.f32 %v451, %v454
  %v457 = vadd.f32 %v452, %v454
  %vm458 = vcmp.gt.f32.partialorder %v456, 0.0
  %vm459 = vcmp.gt.f32.partialorder %v457, 0.0
  %v460 = vmin.f32 %v456, 0.0
  %v461 = vmin.f32 %v457, 0.0
  %v462 = vmul.f32 %v460, 1.442695
  %v463 = vpow.pop %v462
  %v464 = vmul.f32 %v461, 1.442695
  %v465 = vpow.pop %v464
  %v466 = vsub.f32 %v463, 1.0
  %v467 = vsub.f32 %v465, 1.0
  %v468 = vsel %vm458, %v456, %v466
  %v469 = vsel %vm459, %v457, %v467
  %v470 = vpack.c.bf16 %v469, %v468
  %v471 = vld [vmem:[%s5 + $0x4] sm:$0xf]
  %vm472 = vcmask 64512
  %v474 = vsel %vm472, %v470, 0
  %vm476 = vcmask 1043456
  %v478 = vsel %vm476, %v471, 0
  %480 = vmatprep.subr.bf16.mxu0 0
  %481 = vmatpush1.bf16.msra.mxu0 %v478
  %482 = vmatprep.subr.bf16.mxu0 0
  %483 = vmatpush1.bf16.msra.mxu0 0
  %484 = vmatprep.subr.bf16.mxu0 0
  %485 = vmatpush1.bf16.msra.mxu0 0
  %486 = vmatprep.subr.bf16.mxu0 0
  %487 = vmatpush1.bf16.msra.mxu0 0
  %488 = vmatprep.subr.bf16.mxu0 0
  %489 = vmatpush1.bf16.msra.mxu0 0
  %490 = vmatprep.subr.bf16.mxu0 0
  %491 = vmatpush1.bf16.msra.mxu0 0
  %492 = vmatprep.subr.bf16.mxu0 0
  %493 = vmatpush1.bf16.msra.mxu0 0
  %494 = vmatprep.subr.bf16.mxu0 0
  %495 = vmatpush1.bf16.msra.mxu0 0
  %496 = vmatprep.subr.bf16.mxu0 0
  %497 = vmatpush1.bf16.msra.mxu0 0
  %498 = vmatprep.subr.bf16.mxu0 0
  %499 = vmatpush1.bf16.msra.mxu0 0
  %500 = vmatprep.subr.bf16.mxu0 0
  %501 = vmatpush1.bf16.msra.mxu0 0
  %502 = vmatprep.subr.bf16.mxu0 0
  %503 = vmatpush1.bf16.msra.mxu0 0
  %504 = vmatprep.subr.bf16.mxu0 0
  %505 = vmatpush1.bf16.msra.mxu0 0
  %506 = vmatprep.subr.bf16.mxu0 0
  %507 = vmatpush1.bf16.msra.mxu0 0
  %508 = vmatprep.subr.bf16.mxu0 0
  %509 = vmatpush1.bf16.msra.mxu0 0
  %510 = vmatprep.subr.bf16.mxu0 0
  %511 = vmatpush1.bf16.msra.mxu0 0
  %512 = vmatprep.mubr.bf16.mxu0 0
  %513 = vmatmul.mubr.bf16.gmra.mrb[0].mxu0 %v474
  %v514 = vpop.f32.mrb[0].mxu0
  %v515 = vadd.f32 0.0, %v514
  %v516 = vpop.f32.mrb[0].mxu0
  %v517 = vpop.f32.mrb[0].mxu0
  %v518 = vadd.f32 0.0, %v517
  %v519 = vpop.f32.mrb[0].mxu0
  %520 = vdwg.mxu0
  %v522 = vsel %vm472, %v320, 0
  %v525 = vsel %vm476, %v321, 0
  %527 = vmatprep.subr.bf16.mxu0 0
  %528 = vmatpush1.bf16.msra.mxu0 %v525
  %529 = vmatprep.subr.bf16.mxu0 0
  %530 = vmatpush1.bf16.msra.mxu0 0
  %531 = vmatprep.subr.bf16.mxu0 0
  %532 = vmatpush1.bf16.msra.mxu0 0
  %533 = vmatprep.subr.bf16.mxu0 0
  %534 = vmatpush1.bf16.msra.mxu0 0
  %535 = vmatprep.subr.bf16.mxu0 0
  %536 = vmatpush1.bf16.msra.mxu0 0
  %537 = vmatprep.subr.bf16.mxu0 0
  %538 = vmatpush1.bf16.msra.mxu0 0
  %539 = vmatprep.subr.bf16.mxu0 0
  %540 = vmatpush1.bf16.msra.mxu0 0
  %541 = vmatprep.subr.bf16.mxu0 0
  %542 = vmatpush1.bf16.msra.mxu0 0
  %543 = vmatprep.subr.bf16.mxu0 0
  %544 = vmatpush1.bf16.msra.mxu0 0
  %545 = vmatprep.subr.bf16.mxu0 0
  %546 = vmatpush1.bf16.msra.mxu0 0
  %547 = vmatprep.subr.bf16.mxu0 0
  %548 = vmatpush1.bf16.msra.mxu0 0
  %549 = vmatprep.subr.bf16.mxu0 0
  %550 = vmatpush1.bf16.msra.mxu0 0
  %551 = vmatprep.subr.bf16.mxu0 0
  %552 = vmatpush1.bf16.msra.mxu0 0
  %553 = vmatprep.subr.bf16.mxu0 0
  %554 = vmatpush1.bf16.msra.mxu0 0
  %555 = vmatprep.subr.bf16.mxu0 0
  %556 = vmatpush1.bf16.msra.mxu0 0
  %557 = vmatprep.subr.bf16.mxu0 0
  %558 = vmatpush1.bf16.msra.mxu0 0
  %559 = vmatprep.mubr.bf16.mxu0 0
  %560 = vmatmul.mubr.bf16.gmra.mrb[0].mxu0 %v522
  %v561 = vpop.f32.mrb[0].mxu0
  %v562 = vadd.f32 %v515, %v561
  %v563 = vpop.f32.mrb[0].mxu0
  %v564 = vpop.f32.mrb[0].mxu0
  %v565 = vadd.f32 %v518, %v564
  %v566 = vpop.f32.mrb[0].mxu0
  %567 = vdwg.mxu0
  %568 = vrot.lane.b32.xlu0 %v169, 126
  %v569 = vpop.permute.xlu0 %568
  %570 = vrot.lane.b32.xlu0 %v172, 126
  %v571 = vpop.permute.xlu0 %570
  %574 = vxpose.xlu0.b32.start [1/16] %v569, 128
  %575 = vxpose.xlu0.b32.cont [2/16] %v571, 128
  %576 = vxpose.xlu0.b32.cont [3/16] 0.0, 128
  %577 = vxpose.xlu0.b32.cont [4/16] 0.0, 128
  %578 = vxpose.xlu0.b32.cont [5/16] 0.0, 128
  %579 = vxpose.xlu0.b32.cont [6/16] 0.0, 128
  %580 = vxpose.xlu0.b32.cont [7/16] 0.0, 128
  %581 = vxpose.xlu0.b32.cont [8/16] 0.0, 128
  %582 = vxpose.xlu0.b32.cont [9/16] 0.0, 128
  %583 = vxpose.xlu0.b32.cont [10/16] 0.0, 128
  %584 = vxpose.xlu0.b32.cont [11/16] 0.0, 128
  %585 = vxpose.xlu0.b32.cont [12/16] 0.0, 128
  %586 = vxpose.xlu0.b32.cont [13/16] 0.0, 128
  %587 = vxpose.xlu0.b32.cont [14/16] 0.0, 128
  %588 = vxpose.xlu0.b32.cont [15/16] 0.0, 128
  %589 = vxpose.xlu0.b32.end [16/16] 0.0, 128
  %v590 = vpop.trf.xlu0
  %v591 = vpop.trf.xlu0
  %v592 = vpop.trf.xlu0
  %v593 = vpop.trf.xlu0
  %v594 = vpop.trf.xlu0
  %v595 = vpop.trf.xlu0
  %v596 = vpop.trf.xlu0
  %v597 = vpop.trf.xlu0
  %v598 = vpop.trf.xlu0
  %v599 = vpop.trf.xlu0
  %v600 = vpop.trf.xlu0
  %v601 = vpop.trf.xlu0
  %v602 = vpop.trf.xlu0
  %v603 = vpop.trf.xlu0
  %v604 = vpop.trf.xlu0
  %v605 = vpop.trf.xlu0
  %606 = vset.pattern.permute.xlu0 10
  %607 = vperm.xlu0 %606, %v169
  %v608 = vpop.permute.xlu0 %607
  %610 = vset.pattern.permute.xlu0 10
  %611 = vperm.xlu0 %610, %v172
  %v612 = vpop.permute.xlu0 %611
  %v614 = vlaneseq
  %v615 = vshrl.u32 %v614, 7
  %v616 = vsub.s32 0, %v615
  %v617 = vrot.slane %v590, %v616
  %v618 = vadd.f32 %v608, %v617
  %v619 = vadd.f32 %v612, %v617
  %vm620 = vcmp.gt.f32.partialorder %v618, 0.0
  %vm621 = vcmp.gt.f32.partialorder %v619, 0.0
  %v622 = vmul.f32 %v618, 0.2
  %v623 = vmul.f32 %v619, 0.2
  %v624 = vsel %vm620, %v618, %v622
  %v625 = vsel %vm621, %v619, %v623
  %v626 = vadd.f32 %v624, %v29
  %v627 = vadd.f32 %v625, %v30
  %v628 = vsel %vm232, %v626, -inf
  %629 = vmax.xlane.f32.xlu0 %v628
  %v630 = vpop.xlane.xlu0 %629
  %v631 = vsel %vm232, %v627, -inf
  %632 = vmax.xlane.f32.xlu0 %v631
  %v633 = vpop.xlane.xlu0 %632
  %v634 = vsub.f32 %v626, %v630
  %v635 = vsub.f32 %v627, %v633
  %v636 = vmul.f32 %v634, 1.442695
  %v637 = vpow.pop %v636
  %v638 = vmul.f32 %v635, 1.442695
  %v639 = vpow.pop %v638
  %v640 = vsel %vm232, %v637, 0.0
  %641 = vadd.xlane.f32.xlu0 %v640
  %v642 = vpop.xlane.xlu0 %641
  %v643 = vsel %vm232, %v639, 0.0
  %644 = vadd.xlane.f32.xlu0 %v643
  %v645 = vpop.xlane.xlu0 %644
  %v646 = vpack.c.bf16 %v639, %v637
  %647 = vrot.lane.b32.xlu0 %v97, 112
  %v648 = vpop.permute.xlu0 %647
  %v651 = vsel %vm232, %v646, 0
  %653 = vmatprep.subr.bf16.mxu0 0
  %654 = vmatpush1.bf16.msra.mxu0 %v648
  %655 = vmatprep.subr.bf16.mxu0 0
  %656 = vmatpush1.bf16.msra.mxu0 0
  %657 = vmatprep.subr.bf16.mxu0 0
  %658 = vmatpush1.bf16.msra.mxu0 0
  %659 = vmatprep.subr.bf16.mxu0 0
  %660 = vmatpush1.bf16.msra.mxu0 0
  %661 = vmatprep.subr.bf16.mxu0 0
  %662 = vmatpush1.bf16.msra.mxu0 0
  %663 = vmatprep.subr.bf16.mxu0 0
  %664 = vmatpush1.bf16.msra.mxu0 0
  %665 = vmatprep.subr.bf16.mxu0 0
  %666 = vmatpush1.bf16.msra.mxu0 0
  %667 = vmatprep.subr.bf16.mxu0 0
  %668 = vmatpush1.bf16.msra.mxu0 0
  %669 = vmatprep.subr.bf16.mxu0 0
  %670 = vmatpush1.bf16.msra.mxu0 0
  %671 = vmatprep.subr.bf16.mxu0 0
  %672 = vmatpush1.bf16.msra.mxu0 0
  %673 = vmatprep.subr.bf16.mxu0 0
  %674 = vmatpush1.bf16.msra.mxu0 0
  %675 = vmatprep.subr.bf16.mxu0 0
  %676 = vmatpush1.bf16.msra.mxu0 0
  %677 = vmatprep.subr.bf16.mxu0 0
  %678 = vmatpush1.bf16.msra.mxu0 0
  %679 = vmatprep.subr.bf16.mxu0 0
  %680 = vmatpush1.bf16.msra.mxu0 0
  %681 = vmatprep.subr.bf16.mxu0 0
  %682 = vmatpush1.bf16.msra.mxu0 0
  %683 = vmatprep.subr.bf16.mxu0 0
  %684 = vmatpush1.bf16.msra.mxu0 0
  %685 = vmatprep.mubr.bf16.mxu0 0
  %686 = vmatmul.mubr.bf16.gmra.mrb[0].mxu0 %v651
  %v687 = vpop.f32.mrb[0].mxu0
  %v688 = vadd.f32 0.0, %v687
  %v689 = vpop.f32.mrb[0].mxu0
  %v690 = vpop.f32.mrb[0].mxu0
  %v691 = vadd.f32 0.0, %v690
  %v692 = vpop.f32.mrb[0].mxu0
  %693 = vdwg.mxu0
  %v694 = vrcp.pop %v642
  %v695 = vrcp.pop %v645
  %v696 = vmul.f32 %v688, %v694
  %v697 = vmul.f32 %v691, %v695
  %698 = vrot.lane.b32.xlu0 %v304, 112
  %v699 = vpop.permute.xlu0 %698
  %v701 = vadd.f32 %v696, %v699
  %v702 = vadd.f32 %v697, %v699
  %vm703 = vcmp.gt.f32.partialorder %v701, 0.0
  %vm704 = vcmp.gt.f32.partialorder %v702, 0.0
  %v705 = vmin.f32 %v701, 0.0
  %v706 = vmin.f32 %v702, 0.0
  %v707 = vmul.f32 %v705, 1.442695
  %v708 = vpow.pop %v707
  %v709 = vmul.f32 %v706, 1.442695
  %v710 = vpow.pop %v709
  %v711 = vsub.f32 %v708, 1.0
  %v712 = vsub.f32 %v710, 1.0
  %v713 = vsel %vm703, %v701, %v711
  %v714 = vsel %vm704, %v702, %v712
  %v715 = vpack.c.bf16 %v714, %v713
  %v716 = vld [vmem:[%s5 + $0x8] sm:$0xf]
  %v718 = vsel %vm472, %v715, 0
  %v721 = vsel %vm476, %v716, 0
  %723 = vmatprep.subr.bf16.mxu0 0
  %724 = vmatpush1.bf16.msra.mxu0 %v721
  %725 = vmatprep.subr.bf16.mxu0 0
  %726 = vmatpush1.bf16.msra.mxu0 0
  %727 = vmatprep.subr.bf16.mxu0 0
  %728 = vmatpush1.bf16.msra.mxu0 0
  %729 = vmatprep.subr.bf16.mxu0 0
  %730 = vmatpush1.bf16.msra.mxu0 0
  %731 = vmatprep.subr.bf16.mxu0 0
  %732 = vmatpush1.bf16.msra.mxu0 0
  %733 = vmatprep.subr.bf16.mxu0 0
  %734 = vmatpush1.bf16.msra.mxu0 0
  %735 = vmatprep.subr.bf16.mxu0 0
  %736 = vmatpush1.bf16.msra.mxu0 0
  %737 = vmatprep.subr.bf16.mxu0 0
  %738 = vmatpush1.bf16.msra.mxu0 0
  %739 = vmatprep.subr.bf16.mxu0 0
  %740 = vmatpush1.bf16.msra.mxu0 0
  %741 = vmatprep.subr.bf16.mxu0 0
  %742 = vmatpush1.bf16.msra.mxu0 0
  %743 = vmatprep.subr.bf16.mxu0 0
  %744 = vmatpush1.bf16.msra.mxu0 0
  %745 = vmatprep.subr.bf16.mxu0 0
  %746 = vmatpush1.bf16.msra.mxu0 0
  %747 = vmatprep.subr.bf16.mxu0 0
  %748 = vmatpush1.bf16.msra.mxu0 0
  %749 = vmatprep.subr.bf16.mxu0 0
  %750 = vmatpush1.bf16.msra.mxu0 0
  %751 = vmatprep.subr.bf16.mxu0 0
  %752 = vmatpush1.bf16.msra.mxu0 0
  %753 = vmatprep.subr.bf16.mxu0 0
  %754 = vmatpush1.bf16.msra.mxu0 0
  %755 = vmatprep.mubr.bf16.mxu0 0
  %756 = vmatmul.mubr.bf16.gmra.mrb[0].mxu0 %v718
  %v757 = vpop.f32.mrb[0].mxu0
  %v758 = vadd.f32 0.0, %v757
  %v759 = vpop.f32.mrb[0].mxu0
  %v760 = vpop.f32.mrb[0].mxu0
  %v761 = vadd.f32 0.0, %v760
  %v762 = vpop.f32.mrb[0].mxu0
  %763 = vdwg.mxu0
  %v764 = vadd.f32 %v562, %v758
  %v765 = vadd.f32 %v565, %v761
  %766 = vrot.lane.b32.xlu0 %v169, 125
  %v767 = vpop.permute.xlu0 %766
  %768 = vrot.lane.b32.xlu0 %v172, 125
  %v769 = vpop.permute.xlu0 %768
  %772 = vxpose.xlu0.b32.start [1/16] %v767, 128
  %773 = vxpose.xlu0.b32.cont [2/16] %v769, 128
  %774 = vxpose.xlu0.b32.cont [3/16] 0.0, 128
  %775 = vxpose.xlu0.b32.cont [4/16] 0.0, 128
  %776 = vxpose.xlu0.b32.cont [5/16] 0.0, 128
  %777 = vxpose.xlu0.b32.cont [6/16] 0.0, 128
  %778 = vxpose.xlu0.b32.cont [7/16] 0.0, 128
  %779 = vxpose.xlu0.b32.cont [8/16] 0.0, 128
  %780 = vxpose.xlu0.b32.cont [9/16] 0.0, 128
  %781 = vxpose.xlu0.b32.cont [10/16] 0.0, 128
  %782 = vxpose.xlu0.b32.cont [11/16] 0.0, 128
  %783 = vxpose.xlu0.b32.cont [12/16] 0.0, 128
  %784 = vxpose.xlu0.b32.cont [13/16] 0.0, 128
  %785 = vxpose.xlu0.b32.cont [14/16] 0.0, 128
  %786 = vxpose.xlu0.b32.cont [15/16] 0.0, 128
  %787 = vxpose.xlu0.b32.end [16/16] 0.0, 128
  %v788 = vpop.trf.xlu0
  %v789 = vpop.trf.xlu0
  %v790 = vpop.trf.xlu0
  %v791 = vpop.trf.xlu0
  %v792 = vpop.trf.xlu0
  %v793 = vpop.trf.xlu0
  %v794 = vpop.trf.xlu0
  %v795 = vpop.trf.xlu0
  %v796 = vpop.trf.xlu0
  %v797 = vpop.trf.xlu0
  %v798 = vpop.trf.xlu0
  %v799 = vpop.trf.xlu0
  %v800 = vpop.trf.xlu0
  %v801 = vpop.trf.xlu0
  %v802 = vpop.trf.xlu0
  %v803 = vpop.trf.xlu0
  %804 = vset.pattern.permute.xlu0 11
  %805 = vperm.xlu0 %804, %v169
  %v806 = vpop.permute.xlu0 %805
  %808 = vset.pattern.permute.xlu0 11
  %809 = vperm.xlu0 %808, %v172
  %v810 = vpop.permute.xlu0 %809
  %v812 = vlaneseq
  %v813 = vshrl.u32 %v812, 7
  %v814 = vsub.s32 0, %v813
  %v815 = vrot.slane %v788, %v814
  %v816 = vadd.f32 %v806, %v815
  %v817 = vadd.f32 %v810, %v815
  %vm818 = vcmp.gt.f32.partialorder %v816, 0.0
  %vm819 = vcmp.gt.f32.partialorder %v817, 0.0
  %v820 = vmul.f32 %v816, 0.2
  %v821 = vmul.f32 %v817, 0.2
  %v822 = vsel %vm818, %v816, %v820
  %v823 = vsel %vm819, %v817, %v821
  %v824 = vadd.f32 %v822, %v29
  %v825 = vadd.f32 %v823, %v30
  %v826 = vsel %vm232, %v824, -inf
  %827 = vmax.xlane.f32.xlu0 %v826
  %v828 = vpop.xlane.xlu0 %827
  %v829 = vsel %vm232, %v825, -inf
  %830 = vmax.xlane.f32.xlu0 %v829
  %v831 = vpop.xlane.xlu0 %830
  %v832 = vsub.f32 %v824, %v828
  %v833 = vsub.f32 %v825, %v831
  %v834 = vmul.f32 %v832, 1.442695
  %v835 = vpow.pop %v834
  %v836 = vmul.f32 %v833, 1.442695
  %v837 = vpow.pop %v836
  %v838 = vsel %vm232, %v835, 0.0
  %839 = vadd.xlane.f32.xlu0 %v838
  %v840 = vpop.xlane.xlu0 %839
  %v841 = vsel %vm232, %v837, 0.0
  %842 = vadd.xlane.f32.xlu0 %v841
  %v843 = vpop.xlane.xlu0 %842
  %v844 = vpack.c.bf16 %v837, %v835
  %845 = vrot.lane.b32.xlu0 %v97, 104
  %v846 = vpop.permute.xlu0 %845
  %v849 = vsel %vm232, %v844, 0
  %851 = vmatprep.subr.bf16.mxu0 0
  %852 = vmatpush1.bf16.msra.mxu0 %v846
  %853 = vmatprep.subr.bf16.mxu0 0
  %854 = vmatpush1.bf16.msra.mxu0 0
  %855 = vmatprep.subr.bf16.mxu0 0
  %856 = vmatpush1.bf16.msra.mxu0 0
  %857 = vmatprep.subr.bf16.mxu0 0
  %858 = vmatpush1.bf16.msra.mxu0 0
  %859 = vmatprep.subr.bf16.mxu0 0
  %860 = vmatpush1.bf16.msra.mxu0 0
  %861 = vmatprep.subr.bf16.mxu0 0
  %862 = vmatpush1.bf16.msra.mxu0 0
  %863 = vmatprep.subr.bf16.mxu0 0
  %864 = vmatpush1.bf16.msra.mxu0 0
  %865 = vmatprep.subr.bf16.mxu0 0
  %866 = vmatpush1.bf16.msra.mxu0 0
  %867 = vmatprep.subr.bf16.mxu0 0
  %868 = vmatpush1.bf16.msra.mxu0 0
  %869 = vmatprep.subr.bf16.mxu0 0
  %870 = vmatpush1.bf16.msra.mxu0 0
  %871 = vmatprep.subr.bf16.mxu0 0
  %872 = vmatpush1.bf16.msra.mxu0 0
  %873 = vmatprep.subr.bf16.mxu0 0
  %874 = vmatpush1.bf16.msra.mxu0 0
  %875 = vmatprep.subr.bf16.mxu0 0
  %876 = vmatpush1.bf16.msra.mxu0 0
  %877 = vmatprep.subr.bf16.mxu0 0
  %878 = vmatpush1.bf16.msra.mxu0 0
  %879 = vmatprep.subr.bf16.mxu0 0
  %880 = vmatpush1.bf16.msra.mxu0 0
  %881 = vmatprep.subr.bf16.mxu0 0
  %882 = vmatpush1.bf16.msra.mxu0 0
  %883 = vmatprep.mubr.bf16.mxu0 0
  %884 = vmatmul.mubr.bf16.gmra.mrb[0].mxu0 %v849
  %v885 = vpop.f32.mrb[0].mxu0
  %v886 = vadd.f32 0.0, %v885
  %v887 = vpop.f32.mrb[0].mxu0
  %v888 = vpop.f32.mrb[0].mxu0
  %v889 = vadd.f32 0.0, %v888
  %v890 = vpop.f32.mrb[0].mxu0
  %891 = vdwg.mxu0
  %v892 = vrcp.pop %v840
  %v893 = vrcp.pop %v843
  %v894 = vmul.f32 %v886, %v892
  %v895 = vmul.f32 %v889, %v893
  %896 = vrot.lane.b32.xlu0 %v304, 104
  %v897 = vpop.permute.xlu0 %896
  %v899 = vadd.f32 %v894, %v897
  %v900 = vadd.f32 %v895, %v897
  %vm901 = vcmp.gt.f32.partialorder %v899, 0.0
  %vm902 = vcmp.gt.f32.partialorder %v900, 0.0
  %v903 = vmin.f32 %v899, 0.0
  %v904 = vmin.f32 %v900, 0.0
  %v905 = vmul.f32 %v903, 1.442695
  %v906 = vpow.pop %v905
  %v907 = vmul.f32 %v904, 1.442695
  %v908 = vpow.pop %v907
  %v909 = vsub.f32 %v906, 1.0
  %v910 = vsub.f32 %v908, 1.0
  %v911 = vsel %vm901, %v899, %v909
  %v912 = vsel %vm902, %v900, %v910
  %v913 = vpack.c.bf16 %v912, %v911
  %v914 = vld [vmem:[%s5 + $0xc] sm:$0xf]
  %v916 = vsel %vm472, %v913, 0
  %v919 = vsel %vm476, %v914, 0
  %921 = vmatprep.subr.bf16.mxu0 0
  %922 = vmatpush1.bf16.msra.mxu0 %v919
  %923 = vmatprep.subr.bf16.mxu0 0
  %924 = vmatpush1.bf16.msra.mxu0 0
  %925 = vmatprep.subr.bf16.mxu0 0
  %926 = vmatpush1.bf16.msra.mxu0 0
  %927 = vmatprep.subr.bf16.mxu0 0
  %928 = vmatpush1.bf16.msra.mxu0 0
  %929 = vmatprep.subr.bf16.mxu0 0
  %930 = vmatpush1.bf16.msra.mxu0 0
  %931 = vmatprep.subr.bf16.mxu0 0
  %932 = vmatpush1.bf16.msra.mxu0 0
  %933 = vmatprep.subr.bf16.mxu0 0
  %934 = vmatpush1.bf16.msra.mxu0 0
  %935 = vmatprep.subr.bf16.mxu0 0
  %936 = vmatpush1.bf16.msra.mxu0 0
  %937 = vmatprep.subr.bf16.mxu0 0
  %938 = vmatpush1.bf16.msra.mxu0 0
  %939 = vmatprep.subr.bf16.mxu0 0
  %940 = vmatpush1.bf16.msra.mxu0 0
  %941 = vmatprep.subr.bf16.mxu0 0
  %942 = vmatpush1.bf16.msra.mxu0 0
  %943 = vmatprep.subr.bf16.mxu0 0
  %944 = vmatpush1.bf16.msra.mxu0 0
  %945 = vmatprep.subr.bf16.mxu0 0
  %946 = vmatpush1.bf16.msra.mxu0 0
  %947 = vmatprep.subr.bf16.mxu0 0
  %948 = vmatpush1.bf16.msra.mxu0 0
  %949 = vmatprep.subr.bf16.mxu0 0
  %950 = vmatpush1.bf16.msra.mxu0 0
  %951 = vmatprep.subr.bf16.mxu0 0
  %952 = vmatpush1.bf16.msra.mxu0 0
  %953 = vmatprep.mubr.bf16.mxu0 0
  %954 = vmatmul.mubr.bf16.gmra.mrb[0].mxu0 %v916
  %v955 = vpop.f32.mrb[0].mxu0
  %v956 = vadd.f32 0.0, %v955
  %v957 = vpop.f32.mrb[0].mxu0
  %v958 = vpop.f32.mrb[0].mxu0
  %v959 = vadd.f32 0.0, %v958
  %v960 = vpop.f32.mrb[0].mxu0
  %961 = vdwg.mxu0
  %v962 = vadd.f32 %v764, %v956
  %v963 = vadd.f32 %v765, %v959
  %964 = vrot.lane.b32.xlu0 %v169, 124
  %v965 = vpop.permute.xlu0 %964
  %966 = vrot.lane.b32.xlu0 %v172, 124
  %v967 = vpop.permute.xlu0 %966
  %970 = vxpose.xlu0.b32.start [1/16] %v965, 128
  %971 = vxpose.xlu0.b32.cont [2/16] %v967, 128
  %972 = vxpose.xlu0.b32.cont [3/16] 0.0, 128
  %973 = vxpose.xlu0.b32.cont [4/16] 0.0, 128
  %974 = vxpose.xlu0.b32.cont [5/16] 0.0, 128
  %975 = vxpose.xlu0.b32.cont [6/16] 0.0, 128
  %976 = vxpose.xlu0.b32.cont [7/16] 0.0, 128
  %977 = vxpose.xlu0.b32.cont [8/16] 0.0, 128
  %978 = vxpose.xlu0.b32.cont [9/16] 0.0, 128
  %979 = vxpose.xlu0.b32.cont [10/16] 0.0, 128
  %980 = vxpose.xlu0.b32.cont [11/16] 0.0, 128
  %981 = vxpose.xlu0.b32.cont [12/16] 0.0, 128
  %982 = vxpose.xlu0.b32.cont [13/16] 0.0, 128
  %983 = vxpose.xlu0.b32.cont [14/16] 0.0, 128
  %984 = vxpose.xlu0.b32.cont [15/16] 0.0, 128
  %985 = vxpose.xlu0.b32.end [16/16] 0.0, 128
  %v986 = vpop.trf.xlu0
  %v987 = vpop.trf.xlu0
  %v988 = vpop.trf.xlu0
  %v989 = vpop.trf.xlu0
  %v990 = vpop.trf.xlu0
  %v991 = vpop.trf.xlu0
  %v992 = vpop.trf.xlu0
  %v993 = vpop.trf.xlu0
  %v994 = vpop.trf.xlu0
  %v995 = vpop.trf.xlu0
  %v996 = vpop.trf.xlu0
  %v997 = vpop.trf.xlu0
  %v998 = vpop.trf.xlu0
  %v999 = vpop.trf.xlu0
  %v1000 = vpop.trf.xlu0
  %v1001 = vpop.trf.xlu0
  %1002 = vset.pattern.permute.xlu0 12
  %1003 = vperm.xlu0 %1002, %v169
  %v1004 = vpop.permute.xlu0 %1003
  %1006 = vset.pattern.permute.xlu0 12
  %1007 = vperm.xlu0 %1006, %v172
  %v1008 = vpop.permute.xlu0 %1007
  %v1010 = vlaneseq
  %v1011 = vshrl.u32 %v1010, 7
  %v1012 = vsub.s32 0, %v1011
  %v1013 = vrot.slane %v986, %v1012
  %v1014 = vadd.f32 %v1004, %v1013
  %v1015 = vadd.f32 %v1008, %v1013
  %vm1016 = vcmp.gt.f32.partialorder %v1014, 0.0
  %vm1017 = vcmp.gt.f32.partialorder %v1015, 0.0
  %v1018 = vmul.f32 %v1014, 0.2
  %v1019 = vmul.f32 %v1015, 0.2
  %v1020 = vsel %vm1016, %v1014, %v1018
  %v1021 = vsel %vm1017, %v1015, %v1019
  %v1022 = vadd.f32 %v1020, %v29
  %v1023 = vadd.f32 %v1021, %v30
  %v1024 = vsel %vm232, %v1022, -inf
  %1025 = vmax.xlane.f32.xlu0 %v1024
  %v1026 = vpop.xlane.xlu0 %1025
  %v1027 = vsel %vm232, %v1023, -inf
  %1028 = vmax.xlane.f32.xlu0 %v1027
  %v1029 = vpop.xlane.xlu0 %1028
  %v1030 = vsub.f32 %v1022, %v1026
  %v1031 = vsub.f32 %v1023, %v1029
  %v1032 = vmul.f32 %v1030, 1.442695
  %v1033 = vpow.pop %v1032
  %v1034 = vmul.f32 %v1031, 1.442695
  %v1035 = vpow.pop %v1034
  %v1036 = vsel %vm232, %v1033, 0.0
  %1037 = vadd.xlane.f32.xlu0 %v1036
  %v1038 = vpop.xlane.xlu0 %1037
  %v1039 = vsel %vm232, %v1035, 0.0
  %1040 = vadd.xlane.f32.xlu0 %v1039
  %v1041 = vpop.xlane.xlu0 %1040
  %v1042 = vpack.c.bf16 %v1035, %v1033
  %1043 = vrot.lane.b32.xlu0 %v97, 96
  %v1044 = vpop.permute.xlu0 %1043
  %v1047 = vsel %vm232, %v1042, 0
  %1049 = vmatprep.subr.bf16.mxu0 0
  %1050 = vmatpush1.bf16.msra.mxu0 %v1044
  %1051 = vmatprep.subr.bf16.mxu0 0
  %1052 = vmatpush1.bf16.msra.mxu0 0
  %1053 = vmatprep.subr.bf16.mxu0 0
  %1054 = vmatpush1.bf16.msra.mxu0 0
  %1055 = vmatprep.subr.bf16.mxu0 0
  %1056 = vmatpush1.bf16.msra.mxu0 0
  %1057 = vmatprep.subr.bf16.mxu0 0
  %1058 = vmatpush1.bf16.msra.mxu0 0
  %1059 = vmatprep.subr.bf16.mxu0 0
  %1060 = vmatpush1.bf16.msra.mxu0 0
  %1061 = vmatprep.subr.bf16.mxu0 0
  %1062 = vmatpush1.bf16.msra.mxu0 0
  %1063 = vmatprep.subr.bf16.mxu0 0
  %1064 = vmatpush1.bf16.msra.mxu0 0
  %1065 = vmatprep.subr.bf16.mxu0 0
  %1066 = vmatpush1.bf16.msra.mxu0 0
  %1067 = vmatprep.subr.bf16.mxu0 0
  %1068 = vmatpush1.bf16.msra.mxu0 0
  %1069 = vmatprep.subr.bf16.mxu0 0
  %1070 = vmatpush1.bf16.msra.mxu0 0
  %1071 = vmatprep.subr.bf16.mxu0 0
  %1072 = vmatpush1.bf16.msra.mxu0 0
  %1073 = vmatprep.subr.bf16.mxu0 0
  %1074 = vmatpush1.bf16.msra.mxu0 0
  %1075 = vmatprep.subr.bf16.mxu0 0
  %1076 = vmatpush1.bf16.msra.mxu0 0
  %1077 = vmatprep.subr.bf16.mxu0 0
  %1078 = vmatpush1.bf16.msra.mxu0 0
  %1079 = vmatprep.subr.bf16.mxu0 0
  %1080 = vmatpush1.bf16.msra.mxu0 0
  %1081 = vmatprep.mubr.bf16.mxu0 0
  %1082 = vmatmul.mubr.bf16.gmra.mrb[0].mxu0 %v1047
  %v1083 = vpop.f32.mrb[0].mxu0
  %v1084 = vadd.f32 0.0, %v1083
  %v1085 = vpop.f32.mrb[0].mxu0
  %v1086 = vpop.f32.mrb[0].mxu0
  %v1087 = vadd.f32 0.0, %v1086
  %v1088 = vpop.f32.mrb[0].mxu0
  %1089 = vdwg.mxu0
  %v1090 = vrcp.pop %v1038
  %v1091 = vrcp.pop %v1041
  %v1092 = vmul.f32 %v1084, %v1090
  %v1093 = vmul.f32 %v1087, %v1091
  %1094 = vrot.lane.b32.xlu0 %v304, 96
  %v1095 = vpop.permute.xlu0 %1094
  %v1097 = vadd.f32 %v1092, %v1095
  %v1098 = vadd.f32 %v1093, %v1095
  %vm1099 = vcmp.gt.f32.partialorder %v1097, 0.0
  %vm1100 = vcmp.gt.f32.partialorder %v1098, 0.0
  %v1101 = vmin.f32 %v1097, 0.0
  %v1102 = vmin.f32 %v1098, 0.0
  %v1103 = vmul.f32 %v1101, 1.442695
  %v1104 = vpow.pop %v1103
  %v1105 = vmul.f32 %v1102, 1.442695
  %v1106 = vpow.pop %v1105
  %v1107 = vsub.f32 %v1104, 1.0
  %v1108 = vsub.f32 %v1106, 1.0
  %v1109 = vsel %vm1099, %v1097, %v1107
  %v1110 = vsel %vm1100, %v1098, %v1108
  %v1111 = vpack.c.bf16 %v1110, %v1109
  %v1112 = vld [vmem:[%s5 + $0x10] sm:$0xf]
  %v1114 = vsel %vm472, %v1111, 0
  %v1117 = vsel %vm476, %v1112, 0
  %1119 = vmatprep.subr.bf16.mxu0 0
  %1120 = vmatpush1.bf16.msra.mxu0 %v1117
  %1121 = vmatprep.subr.bf16.mxu0 0
  %1122 = vmatpush1.bf16.msra.mxu0 0
  %1123 = vmatprep.subr.bf16.mxu0 0
  %1124 = vmatpush1.bf16.msra.mxu0 0
  %1125 = vmatprep.subr.bf16.mxu0 0
  %1126 = vmatpush1.bf16.msra.mxu0 0
  %1127 = vmatprep.subr.bf16.mxu0 0
  %1128 = vmatpush1.bf16.msra.mxu0 0
  %1129 = vmatprep.subr.bf16.mxu0 0
  %1130 = vmatpush1.bf16.msra.mxu0 0
  %1131 = vmatprep.subr.bf16.mxu0 0
  %1132 = vmatpush1.bf16.msra.mxu0 0
  %1133 = vmatprep.subr.bf16.mxu0 0
  %1134 = vmatpush1.bf16.msra.mxu0 0
  %1135 = vmatprep.subr.bf16.mxu0 0
  %1136 = vmatpush1.bf16.msra.mxu0 0
  %1137 = vmatprep.subr.bf16.mxu0 0
  %1138 = vmatpush1.bf16.msra.mxu0 0
  %1139 = vmatprep.subr.bf16.mxu0 0
  %1140 = vmatpush1.bf16.msra.mxu0 0
  %1141 = vmatprep.subr.bf16.mxu0 0
  %1142 = vmatpush1.bf16.msra.mxu0 0
  %1143 = vmatprep.subr.bf16.mxu0 0
  %1144 = vmatpush1.bf16.msra.mxu0 0
  %1145 = vmatprep.subr.bf16.mxu0 0
  %1146 = vmatpush1.bf16.msra.mxu0 0
  %1147 = vmatprep.subr.bf16.mxu0 0
  %1148 = vmatpush1.bf16.msra.mxu0 0
  %1149 = vmatprep.subr.bf16.mxu0 0
  %1150 = vmatpush1.bf16.msra.mxu0 0
  %1151 = vmatprep.mubr.bf16.mxu0 0
  %1152 = vmatmul.mubr.bf16.gmra.mrb[0].mxu0 %v1114
  %v1153 = vpop.f32.mrb[0].mxu0
  %v1154 = vadd.f32 0.0, %v1153
  %v1155 = vpop.f32.mrb[0].mxu0
  %v1156 = vpop.f32.mrb[0].mxu0
  %v1157 = vadd.f32 0.0, %v1156
  %v1158 = vpop.f32.mrb[0].mxu0
  %1159 = vdwg.mxu0
  %v1160 = vadd.f32 %v962, %v1154
  %v1161 = vadd.f32 %v963, %v1157
  %1162 = vrot.lane.b32.xlu0 %v169, 123
  %v1163 = vpop.permute.xlu0 %1162
  %1164 = vrot.lane.b32.xlu0 %v172, 123
  %v1165 = vpop.permute.xlu0 %1164
  %1168 = vxpose.xlu0.b32.start [1/16] %v1163, 128
  %1169 = vxpose.xlu0.b32.cont [2/16] %v1165, 128
  %1170 = vxpose.xlu0.b32.cont [3/16] 0.0, 128
  %1171 = vxpose.xlu0.b32.cont [4/16] 0.0, 128
  %1172 = vxpose.xlu0.b32.cont [5/16] 0.0, 128
  %1173 = vxpose.xlu0.b32.cont [6/16] 0.0, 128
  %1174 = vxpose.xlu0.b32.cont [7/16] 0.0, 128
  %1175 = vxpose.xlu0.b32.cont [8/16] 0.0, 128
  %1176 = vxpose.xlu0.b32.cont [9/16] 0.0, 128
  %1177 = vxpose.xlu0.b32.cont [10/16] 0.0, 128
  %1178 = vxpose.xlu0.b32.cont [11/16] 0.0, 128
  %1179 = vxpose.xlu0.b32.cont [12/16] 0.0, 128
  %1180 = vxpose.xlu0.b32.cont [13/16] 0.0, 128
  %1181 = vxpose.xlu0.b32.cont [14/16] 0.0, 128
  %1182 = vxpose.xlu0.b32.cont [15/16] 0.0, 128
  %1183 = vxpose.xlu0.b32.end [16/16] 0.0, 128
  %v1184 = vpop.trf.xlu0
  %v1185 = vpop.trf.xlu0
  %v1186 = vpop.trf.xlu0
  %v1187 = vpop.trf.xlu0
  %v1188 = vpop.trf.xlu0
  %v1189 = vpop.trf.xlu0
  %v1190 = vpop.trf.xlu0
  %v1191 = vpop.trf.xlu0
  %v1192 = vpop.trf.xlu0
  %v1193 = vpop.trf.xlu0
  %v1194 = vpop.trf.xlu0
  %v1195 = vpop.trf.xlu0
  %v1196 = vpop.trf.xlu0
  %v1197 = vpop.trf.xlu0
  %v1198 = vpop.trf.xlu0
  %v1199 = vpop.trf.xlu0
  %1200 = vset.pattern.permute.xlu0 13
  %1201 = vperm.xlu0 %1200, %v169
  %v1202 = vpop.permute.xlu0 %1201
  %1204 = vset.pattern.permute.xlu0 13
  %1205 = vperm.xlu0 %1204, %v172
  %v1206 = vpop.permute.xlu0 %1205
  %v1208 = vlaneseq
  %v1209 = vshrl.u32 %v1208, 7
  %v1210 = vsub.s32 0, %v1209
  %v1211 = vrot.slane %v1184, %v1210
  %v1212 = vadd.f32 %v1202, %v1211
  %v1213 = vadd.f32 %v1206, %v1211
  %vm1214 = vcmp.gt.f32.partialorder %v1212, 0.0
  %vm1215 = vcmp.gt.f32.partialorder %v1213, 0.0
  %v1216 = vmul.f32 %v1212, 0.2
  %v1217 = vmul.f32 %v1213, 0.2
  %v1218 = vsel %vm1214, %v1212, %v1216
  %v1219 = vsel %vm1215, %v1213, %v1217
  %v1220 = vadd.f32 %v1218, %v29
  %v1221 = vadd.f32 %v1219, %v30
  %v1222 = vsel %vm232, %v1220, -inf
  %1223 = vmax.xlane.f32.xlu0 %v1222
  %v1224 = vpop.xlane.xlu0 %1223
  %v1225 = vsel %vm232, %v1221, -inf
  %1226 = vmax.xlane.f32.xlu0 %v1225
  %v1227 = vpop.xlane.xlu0 %1226
  %v1228 = vsub.f32 %v1220, %v1224
  %v1229 = vsub.f32 %v1221, %v1227
  %v1230 = vmul.f32 %v1228, 1.442695
  %v1231 = vpow.pop %v1230
  %v1232 = vmul.f32 %v1229, 1.442695
  %v1233 = vpow.pop %v1232
  %v1234 = vsel %vm232, %v1231, 0.0
  %1235 = vadd.xlane.f32.xlu0 %v1234
  %v1236 = vpop.xlane.xlu0 %1235
  %v1237 = vsel %vm232, %v1233, 0.0
  %1238 = vadd.xlane.f32.xlu0 %v1237
  %v1239 = vpop.xlane.xlu0 %1238
  %v1240 = vpack.c.bf16 %v1233, %v1231
  %1241 = vrot.lane.b32.xlu0 %v97, 88
  %v1242 = vpop.permute.xlu0 %1241
  %v1245 = vsel %vm232, %v1240, 0
  %1247 = vmatprep.subr.bf16.mxu0 0
  %1248 = vmatpush1.bf16.msra.mxu0 %v1242
  %1249 = vmatprep.subr.bf16.mxu0 0
  %1250 = vmatpush1.bf16.msra.mxu0 0
  %1251 = vmatprep.subr.bf16.mxu0 0
  %1252 = vmatpush1.bf16.msra.mxu0 0
  %1253 = vmatprep.subr.bf16.mxu0 0
  %1254 = vmatpush1.bf16.msra.mxu0 0
  %1255 = vmatprep.subr.bf16.mxu0 0
  %1256 = vmatpush1.bf16.msra.mxu0 0
  %1257 = vmatprep.subr.bf16.mxu0 0
  %1258 = vmatpush1.bf16.msra.mxu0 0
  %1259 = vmatprep.subr.bf16.mxu0 0
  %1260 = vmatpush1.bf16.msra.mxu0 0
  %1261 = vmatprep.subr.bf16.mxu0 0
  %1262 = vmatpush1.bf16.msra.mxu0 0
  %1263 = vmatprep.subr.bf16.mxu0 0
  %1264 = vmatpush1.bf16.msra.mxu0 0
  %1265 = vmatprep.subr.bf16.mxu0 0
  %1266 = vmatpush1.bf16.msra.mxu0 0
  %1267 = vmatprep.subr.bf16.mxu0 0
  %1268 = vmatpush1.bf16.msra.mxu0 0
  %1269 = vmatprep.subr.bf16.mxu0 0
  %1270 = vmatpush1.bf16.msra.mxu0 0
  %1271 = vmatprep.subr.bf16.mxu0 0
  %1272 = vmatpush1.bf16.msra.mxu0 0
  %1273 = vmatprep.subr.bf16.mxu0 0
  %1274 = vmatpush1.bf16.msra.mxu0 0
  %1275 = vmatprep.subr.bf16.mxu0 0
  %1276 = vmatpush1.bf16.msra.mxu0 0
  %1277 = vmatprep.subr.bf16.mxu0 0
  %1278 = vmatpush1.bf16.msra.mxu0 0
  %1279 = vmatprep.mubr.bf16.mxu0 0
  %1280 = vmatmul.mubr.bf16.gmra.mrb[0].mxu0 %v1245
  %v1281 = vpop.f32.mrb[0].mxu0
  %v1282 = vadd.f32 0.0, %v1281
  %v1283 = vpop.f32.mrb[0].mxu0
  %v1284 = vpop.f32.mrb[0].mxu0
  %v1285 = vadd.f32 0.0, %v1284
  %v1286 = vpop.f32.mrb[0].mxu0
  %1287 = vdwg.mxu0
  %v1288 = vrcp.pop %v1236
  %v1289 = vrcp.pop %v1239
  %v1290 = vmul.f32 %v1282, %v1288
  %v1291 = vmul.f32 %v1285, %v1289
  %1292 = vrot.lane.b32.xlu0 %v304, 88
  %v1293 = vpop.permute.xlu0 %1292
  %v1295 = vadd.f32 %v1290, %v1293
  %v1296 = vadd.f32 %v1291, %v1293
  %vm1297 = vcmp.gt.f32.partialorder %v1295, 0.0
  %vm1298 = vcmp.gt.f32.partialorder %v1296, 0.0
  %v1299 = vmin.f32 %v1295, 0.0
  %v1300 = vmin.f32 %v1296, 0.0
  %v1301 = vmul.f32 %v1299, 1.442695
  %v1302 = vpow.pop %v1301
  %v1303 = vmul.f32 %v1300, 1.442695
  %v1304 = vpow.pop %v1303
  %v1305 = vsub.f32 %v1302, 1.0
  %v1306 = vsub.f32 %v1304, 1.0
  %v1307 = vsel %vm1297, %v1295, %v1305
  %v1308 = vsel %vm1298, %v1296, %v1306
  %v1309 = vpack.c.bf16 %v1308, %v1307
  %v1310 = vld [vmem:[%s5 + $0x14] sm:$0xf]
  %v1312 = vsel %vm472, %v1309, 0
  %v1315 = vsel %vm476, %v1310, 0
  %1317 = vmatprep.subr.bf16.mxu0 0
  %1318 = vmatpush1.bf16.msra.mxu0 %v1315
  %1319 = vmatprep.subr.bf16.mxu0 0
  %1320 = vmatpush1.bf16.msra.mxu0 0
  %1321 = vmatprep.subr.bf16.mxu0 0
  %1322 = vmatpush1.bf16.msra.mxu0 0
  %1323 = vmatprep.subr.bf16.mxu0 0
  %1324 = vmatpush1.bf16.msra.mxu0 0
  %1325 = vmatprep.subr.bf16.mxu0 0
  %1326 = vmatpush1.bf16.msra.mxu0 0
  %1327 = vmatprep.subr.bf16.mxu0 0
  %1328 = vmatpush1.bf16.msra.mxu0 0
  %1329 = vmatprep.subr.bf16.mxu0 0
  %1330 = vmatpush1.bf16.msra.mxu0 0
  %1331 = vmatprep.subr.bf16.mxu0 0
  %1332 = vmatpush1.bf16.msra.mxu0 0
  %1333 = vmatprep.subr.bf16.mxu0 0
  %1334 = vmatpush1.bf16.msra.mxu0 0
  %1335 = vmatprep.subr.bf16.mxu0 0
  %1336 = vmatpush1.bf16.msra.mxu0 0
  %1337 = vmatprep.subr.bf16.mxu0 0
  %1338 = vmatpush1.bf16.msra.mxu0 0
  %1339 = vmatprep.subr.bf16.mxu0 0
  %1340 = vmatpush1.bf16.msra.mxu0 0
  %1341 = vmatprep.subr.bf16.mxu0 0
  %1342 = vmatpush1.bf16.msra.mxu0 0
  %1343 = vmatprep.subr.bf16.mxu0 0
  %1344 = vmatpush1.bf16.msra.mxu0 0
  %1345 = vmatprep.subr.bf16.mxu0 0
  %1346 = vmatpush1.bf16.msra.mxu0 0
  %1347 = vmatprep.subr.bf16.mxu0 0
  %1348 = vmatpush1.bf16.msra.mxu0 0
  %1349 = vmatprep.mubr.bf16.mxu0 0
  %1350 = vmatmul.mubr.bf16.gmra.mrb[0].mxu0 %v1312
  %v1351 = vpop.f32.mrb[0].mxu0
  %v1352 = vadd.f32 0.0, %v1351
  %v1353 = vpop.f32.mrb[0].mxu0
  %v1354 = vpop.f32.mrb[0].mxu0
  %v1355 = vadd.f32 0.0, %v1354
  %v1356 = vpop.f32.mrb[0].mxu0
  %1357 = vdwg.mxu0
  %v1358 = vadd.f32 %v1160, %v1352
  %v1359 = vadd.f32 %v1161, %v1355
  %1360 = vrot.lane.b32.xlu0 %v169, 122
  %v1361 = vpop.permute.xlu0 %1360
  %1362 = vrot.lane.b32.xlu0 %v172, 122
  %v1363 = vpop.permute.xlu0 %1362
  %1366 = vxpose.xlu0.b32.start [1/16] %v1361, 128
  %1367 = vxpose.xlu0.b32.cont [2/16] %v1363, 128
  %1368 = vxpose.xlu0.b32.cont [3/16] 0.0, 128
  %1369 = vxpose.xlu0.b32.cont [4/16] 0.0, 128
  %1370 = vxpose.xlu0.b32.cont [5/16] 0.0, 128
  %1371 = vxpose.xlu0.b32.cont [6/16] 0.0, 128
  %1372 = vxpose.xlu0.b32.cont [7/16] 0.0, 128
  %1373 = vxpose.xlu0.b32.cont [8/16] 0.0, 128
  %1374 = vxpose.xlu0.b32.cont [9/16] 0.0, 128
  %1375 = vxpose.xlu0.b32.cont [10/16] 0.0, 128
  %1376 = vxpose.xlu0.b32.cont [11/16] 0.0, 128
  %1377 = vxpose.xlu0.b32.cont [12/16] 0.0, 128
  %1378 = vxpose.xlu0.b32.cont [13/16] 0.0, 128
  %1379 = vxpose.xlu0.b32.cont [14/16] 0.0, 128
  %1380 = vxpose.xlu0.b32.cont [15/16] 0.0, 128
  %1381 = vxpose.xlu0.b32.end [16/16] 0.0, 128
  %v1382 = vpop.trf.xlu0
  %v1383 = vpop.trf.xlu0
  %v1384 = vpop.trf.xlu0
  %v1385 = vpop.trf.xlu0
  %v1386 = vpop.trf.xlu0
  %v1387 = vpop.trf.xlu0
  %v1388 = vpop.trf.xlu0
  %v1389 = vpop.trf.xlu0
  %v1390 = vpop.trf.xlu0
  %v1391 = vpop.trf.xlu0
  %v1392 = vpop.trf.xlu0
  %v1393 = vpop.trf.xlu0
  %v1394 = vpop.trf.xlu0
  %v1395 = vpop.trf.xlu0
  %v1396 = vpop.trf.xlu0
  %v1397 = vpop.trf.xlu0
  %1398 = vset.pattern.permute.xlu0 14
  %1399 = vperm.xlu0 %1398, %v169
  %v1400 = vpop.permute.xlu0 %1399
  %1402 = vset.pattern.permute.xlu0 14
  %1403 = vperm.xlu0 %1402, %v172
  %v1404 = vpop.permute.xlu0 %1403
  %v1406 = vlaneseq
  %v1407 = vshrl.u32 %v1406, 7
  %v1408 = vsub.s32 0, %v1407
  %v1409 = vrot.slane %v1382, %v1408
  %v1410 = vadd.f32 %v1400, %v1409
  %v1411 = vadd.f32 %v1404, %v1409
  %vm1412 = vcmp.gt.f32.partialorder %v1410, 0.0
  %vm1413 = vcmp.gt.f32.partialorder %v1411, 0.0
  %v1414 = vmul.f32 %v1410, 0.2
  %v1415 = vmul.f32 %v1411, 0.2
  %v1416 = vsel %vm1412, %v1410, %v1414
  %v1417 = vsel %vm1413, %v1411, %v1415
  %v1418 = vadd.f32 %v1416, %v29
  %v1419 = vadd.f32 %v1417, %v30
  %v1420 = vsel %vm232, %v1418, -inf
  %1421 = vmax.xlane.f32.xlu0 %v1420
  %v1422 = vpop.xlane.xlu0 %1421
  %v1423 = vsel %vm232, %v1419, -inf
  %1424 = vmax.xlane.f32.xlu0 %v1423
  %v1425 = vpop.xlane.xlu0 %1424
  %v1426 = vsub.f32 %v1418, %v1422
  %v1427 = vsub.f32 %v1419, %v1425
  %v1428 = vmul.f32 %v1426, 1.442695
  %v1429 = vpow.pop %v1428
  %v1430 = vmul.f32 %v1427, 1.442695
  %v1431 = vpow.pop %v1430
  %v1432 = vsel %vm232, %v1429, 0.0
  %1433 = vadd.xlane.f32.xlu0 %v1432
  %v1434 = vpop.xlane.xlu0 %1433
  %v1435 = vsel %vm232, %v1431, 0.0
  %1436 = vadd.xlane.f32.xlu0 %v1435
  %v1437 = vpop.xlane.xlu0 %1436
  %v1438 = vpack.c.bf16 %v1431, %v1429
  %1439 = vrot.lane.b32.xlu0 %v97, 80
  %v1440 = vpop.permute.xlu0 %1439
  %v1443 = vsel %vm232, %v1438, 0
  %1445 = vmatprep.subr.bf16.mxu0 0
  %1446 = vmatpush1.bf16.msra.mxu0 %v1440
  %1447 = vmatprep.subr.bf16.mxu0 0
  %1448 = vmatpush1.bf16.msra.mxu0 0
  %1449 = vmatprep.subr.bf16.mxu0 0
  %1450 = vmatpush1.bf16.msra.mxu0 0
  %1451 = vmatprep.subr.bf16.mxu0 0
  %1452 = vmatpush1.bf16.msra.mxu0 0
  %1453 = vmatprep.subr.bf16.mxu0 0
  %1454 = vmatpush1.bf16.msra.mxu0 0
  %1455 = vmatprep.subr.bf16.mxu0 0
  %1456 = vmatpush1.bf16.msra.mxu0 0
  %1457 = vmatprep.subr.bf16.mxu0 0
  %1458 = vmatpush1.bf16.msra.mxu0 0
  %1459 = vmatprep.subr.bf16.mxu0 0
  %1460 = vmatpush1.bf16.msra.mxu0 0
  %1461 = vmatprep.subr.bf16.mxu0 0
  %1462 = vmatpush1.bf16.msra.mxu0 0
  %1463 = vmatprep.subr.bf16.mxu0 0
  %1464 = vmatpush1.bf16.msra.mxu0 0
  %1465 = vmatprep.subr.bf16.mxu0 0
  %1466 = vmatpush1.bf16.msra.mxu0 0
  %1467 = vmatprep.subr.bf16.mxu0 0
  %1468 = vmatpush1.bf16.msra.mxu0 0
  %1469 = vmatprep.subr.bf16.mxu0 0
  %1470 = vmatpush1.bf16.msra.mxu0 0
  %1471 = vmatprep.subr.bf16.mxu0 0
  %1472 = vmatpush1.bf16.msra.mxu0 0
  %1473 = vmatprep.subr.bf16.mxu0 0
  %1474 = vmatpush1.bf16.msra.mxu0 0
  %1475 = vmatprep.subr.bf16.mxu0 0
  %1476 = vmatpush1.bf16.msra.mxu0 0
  %1477 = vmatprep.mubr.bf16.mxu0 0
  %1478 = vmatmul.mubr.bf16.gmra.mrb[0].mxu0 %v1443
  %v1479 = vpop.f32.mrb[0].mxu0
  %v1480 = vadd.f32 0.0, %v1479
  %v1481 = vpop.f32.mrb[0].mxu0
  %v1482 = vpop.f32.mrb[0].mxu0
  %v1483 = vadd.f32 0.0, %v1482
  %v1484 = vpop.f32.mrb[0].mxu0
  %1485 = vdwg.mxu0
  %v1486 = vrcp.pop %v1434
  %v1487 = vrcp.pop %v1437
  %v1488 = vmul.f32 %v1480, %v1486
  %v1489 = vmul.f32 %v1483, %v1487
  %1490 = vrot.lane.b32.xlu0 %v304, 80
  %v1491 = vpop.permute.xlu0 %1490
  %v1493 = vadd.f32 %v1488, %v1491
  %v1494 = vadd.f32 %v1489, %v1491
  %vm1495 = vcmp.gt.f32.partialorder %v1493, 0.0
  %vm1496 = vcmp.gt.f32.partialorder %v1494, 0.0
  %v1497 = vmin.f32 %v1493, 0.0
  %v1498 = vmin.f32 %v1494, 0.0
  %v1499 = vmul.f32 %v1497, 1.442695
  %v1500 = vpow.pop %v1499
  %v1501 = vmul.f32 %v1498, 1.442695
  %v1502 = vpow.pop %v1501
  %v1503 = vsub.f32 %v1500, 1.0
  %v1504 = vsub.f32 %v1502, 1.0
  %v1505 = vsel %vm1495, %v1493, %v1503
  %v1506 = vsel %vm1496, %v1494, %v1504
  %v1507 = vpack.c.bf16 %v1506, %v1505
  %v1508 = vld [vmem:[%s5 + $0x18] sm:$0xf]
  %v1510 = vsel %vm472, %v1507, 0
  %v1513 = vsel %vm476, %v1508, 0
  %1515 = vmatprep.subr.bf16.mxu0 0
  %1516 = vmatpush1.bf16.msra.mxu0 %v1513
  %1517 = vmatprep.subr.bf16.mxu0 0
  %1518 = vmatpush1.bf16.msra.mxu0 0
  %1519 = vmatprep.subr.bf16.mxu0 0
  %1520 = vmatpush1.bf16.msra.mxu0 0
  %1521 = vmatprep.subr.bf16.mxu0 0
  %1522 = vmatpush1.bf16.msra.mxu0 0
  %1523 = vmatprep.subr.bf16.mxu0 0
  %1524 = vmatpush1.bf16.msra.mxu0 0
  %1525 = vmatprep.subr.bf16.mxu0 0
  %1526 = vmatpush1.bf16.msra.mxu0 0
  %1527 = vmatprep.subr.bf16.mxu0 0
  %1528 = vmatpush1.bf16.msra.mxu0 0
  %1529 = vmatprep.subr.bf16.mxu0 0
  %1530 = vmatpush1.bf16.msra.mxu0 0
  %1531 = vmatprep.subr.bf16.mxu0 0
  %1532 = vmatpush1.bf16.msra.mxu0 0
  %1533 = vmatprep.subr.bf16.mxu0 0
  %1534 = vmatpush1.bf16.msra.mxu0 0
  %1535 = vmatprep.subr.bf16.mxu0 0
  %1536 = vmatpush1.bf16.msra.mxu0 0
  %1537 = vmatprep.subr.bf16.mxu0 0
  %1538 = vmatpush1.bf16.msra.mxu0 0
  %1539 = vmatprep.subr.bf16.mxu0 0
  %1540 = vmatpush1.bf16.msra.mxu0 0
  %1541 = vmatprep.subr.bf16.mxu0 0
  %1542 = vmatpush1.bf16.msra.mxu0 0
  %1543 = vmatprep.subr.bf16.mxu0 0
  %1544 = vmatpush1.bf16.msra.mxu0 0
  %1545 = vmatprep.subr.bf16.mxu0 0
  %1546 = vmatpush1.bf16.msra.mxu0 0
  %1547 = vmatprep.mubr.bf16.mxu0 0
  %1548 = vmatmul.mubr.bf16.gmra.mrb[0].mxu0 %v1510
  %v1549 = vpop.f32.mrb[0].mxu0
  %v1550 = vadd.f32 0.0, %v1549
  %v1551 = vpop.f32.mrb[0].mxu0
  %v1552 = vpop.f32.mrb[0].mxu0
  %v1553 = vadd.f32 0.0, %v1552
  %v1554 = vpop.f32.mrb[0].mxu0
  %1555 = vdwg.mxu0
  %v1556 = vadd.f32 %v1358, %v1550
  %v1557 = vadd.f32 %v1359, %v1553
  %1558 = vrot.lane.b32.xlu0 %v169, 121
  %v1559 = vpop.permute.xlu0 %1558
  %1560 = vrot.lane.b32.xlu0 %v172, 121
  %v1561 = vpop.permute.xlu0 %1560
  %1564 = vxpose.xlu0.b32.start [1/16] %v1559, 128
  %1565 = vxpose.xlu0.b32.cont [2/16] %v1561, 128
  %1566 = vxpose.xlu0.b32.cont [3/16] 0.0, 128
  %1567 = vxpose.xlu0.b32.cont [4/16] 0.0, 128
  %1568 = vxpose.xlu0.b32.cont [5/16] 0.0, 128
  %1569 = vxpose.xlu0.b32.cont [6/16] 0.0, 128
  %1570 = vxpose.xlu0.b32.cont [7/16] 0.0, 128
  %1571 = vxpose.xlu0.b32.cont [8/16] 0.0, 128
  %1572 = vxpose.xlu0.b32.cont [9/16] 0.0, 128
  %1573 = vxpose.xlu0.b32.cont [10/16] 0.0, 128
  %1574 = vxpose.xlu0.b32.cont [11/16] 0.0, 128
  %1575 = vxpose.xlu0.b32.cont [12/16] 0.0, 128
  %1576 = vxpose.xlu0.b32.cont [13/16] 0.0, 128
  %1577 = vxpose.xlu0.b32.cont [14/16] 0.0, 128
  %1578 = vxpose.xlu0.b32.cont [15/16] 0.0, 128
  %1579 = vxpose.xlu0.b32.end [16/16] 0.0, 128
  %v1580 = vpop.trf.xlu0
  %v1581 = vpop.trf.xlu0
  %v1582 = vpop.trf.xlu0
  %v1583 = vpop.trf.xlu0
  %v1584 = vpop.trf.xlu0
  %v1585 = vpop.trf.xlu0
  %v1586 = vpop.trf.xlu0
  %v1587 = vpop.trf.xlu0
  %v1588 = vpop.trf.xlu0
  %v1589 = vpop.trf.xlu0
  %v1590 = vpop.trf.xlu0
  %v1591 = vpop.trf.xlu0
  %v1592 = vpop.trf.xlu0
  %v1593 = vpop.trf.xlu0
  %v1594 = vpop.trf.xlu0
  %v1595 = vpop.trf.xlu0
  %1596 = vset.pattern.permute.xlu0 15
  %1597 = vperm.xlu0 %1596, %v169
  %v1598 = vpop.permute.xlu0 %1597
  %1600 = vset.pattern.permute.xlu0 15
  %1601 = vperm.xlu0 %1600, %v172
  %v1602 = vpop.permute.xlu0 %1601
  %v1604 = vlaneseq
  %v1605 = vshrl.u32 %v1604, 7
  %v1606 = vsub.s32 0, %v1605
  %v1607 = vrot.slane %v1580, %v1606
  %v1608 = vadd.f32 %v1598, %v1607
  %v1609 = vadd.f32 %v1602, %v1607
  %vm1610 = vcmp.gt.f32.partialorder %v1608, 0.0
  %vm1611 = vcmp.gt.f32.partialorder %v1609, 0.0
  %v1612 = vmul.f32 %v1608, 0.2
  %v1613 = vmul.f32 %v1609, 0.2
  %v1614 = vsel %vm1610, %v1608, %v1612
  %v1615 = vsel %vm1611, %v1609, %v1613
  %v1616 = vadd.f32 %v1614, %v29
  %v1617 = vadd.f32 %v1615, %v30
  %v1618 = vsel %vm232, %v1616, -inf
  %1619 = vmax.xlane.f32.xlu0 %v1618
  %v1620 = vpop.xlane.xlu0 %1619
  %v1621 = vsel %vm232, %v1617, -inf
  %1622 = vmax.xlane.f32.xlu0 %v1621
  %v1623 = vpop.xlane.xlu0 %1622
  %v1624 = vsub.f32 %v1616, %v1620
  %v1625 = vsub.f32 %v1617, %v1623
  %v1626 = vmul.f32 %v1624, 1.442695
  %v1627 = vpow.pop %v1626
  %v1628 = vmul.f32 %v1625, 1.442695
  %v1629 = vpow.pop %v1628
  %v1630 = vsel %vm232, %v1627, 0.0
  %1631 = vadd.xlane.f32.xlu0 %v1630
  %v1632 = vpop.xlane.xlu0 %1631
  %v1633 = vsel %vm232, %v1629, 0.0
  %1634 = vadd.xlane.f32.xlu0 %v1633
  %v1635 = vpop.xlane.xlu0 %1634
  %v1636 = vpack.c.bf16 %v1629, %v1627
  %1637 = vrot.lane.b32.xlu0 %v97, 72
  %v1638 = vpop.permute.xlu0 %1637
  %v1641 = vsel %vm232, %v1636, 0
  %1643 = vmatprep.subr.bf16.mxu0 0
  %1644 = vmatpush1.bf16.msra.mxu0 %v1638
  %1645 = vmatprep.subr.bf16.mxu0 0
  %1646 = vmatpush1.bf16.msra.mxu0 0
  %1647 = vmatprep.subr.bf16.mxu0 0
  %1648 = vmatpush1.bf16.msra.mxu0 0
  %1649 = vmatprep.subr.bf16.mxu0 0
  %1650 = vmatpush1.bf16.msra.mxu0 0
  %1651 = vmatprep.subr.bf16.mxu0 0
  %1652 = vmatpush1.bf16.msra.mxu0 0
  %1653 = vmatprep.subr.bf16.mxu0 0
  %1654 = vmatpush1.bf16.msra.mxu0 0
  %1655 = vmatprep.subr.bf16.mxu0 0
  %1656 = vmatpush1.bf16.msra.mxu0 0
  %1657 = vmatprep.subr.bf16.mxu0 0
  %1658 = vmatpush1.bf16.msra.mxu0 0
  %1659 = vmatprep.subr.bf16.mxu0 0
  %1660 = vmatpush1.bf16.msra.mxu0 0
  %1661 = vmatprep.subr.bf16.mxu0 0
  %1662 = vmatpush1.bf16.msra.mxu0 0
  %1663 = vmatprep.subr.bf16.mxu0 0
  %1664 = vmatpush1.bf16.msra.mxu0 0
  %1665 = vmatprep.subr.bf16.mxu0 0
  %1666 = vmatpush1.bf16.msra.mxu0 0
  %1667 = vmatprep.subr.bf16.mxu0 0
  %1668 = vmatpush1.bf16.msra.mxu0 0
  %1669 = vmatprep.subr.bf16.mxu0 0
  %1670 = vmatpush1.bf16.msra.mxu0 0
  %1671 = vmatprep.subr.bf16.mxu0 0
  %1672 = vmatpush1.bf16.msra.mxu0 0
  %1673 = vmatprep.subr.bf16.mxu0 0
  %1674 = vmatpush1.bf16.msra.mxu0 0
  %1675 = vmatprep.mubr.bf16.mxu0 0
  %1676 = vmatmul.mubr.bf16.gmra.mrb[0].mxu0 %v1641
  %v1677 = vpop.f32.mrb[0].mxu0
  %v1678 = vadd.f32 0.0, %v1677
  %v1679 = vpop.f32.mrb[0].mxu0
  %v1680 = vpop.f32.mrb[0].mxu0
  %v1681 = vadd.f32 0.0, %v1680
  %v1682 = vpop.f32.mrb[0].mxu0
  %1683 = vdwg.mxu0
  %v1684 = vrcp.pop %v1632
  %v1685 = vrcp.pop %v1635
  %v1686 = vmul.f32 %v1678, %v1684
  %v1687 = vmul.f32 %v1681, %v1685
  %1688 = vrot.lane.b32.xlu0 %v304, 72
  %v1689 = vpop.permute.xlu0 %1688
  %v1691 = vadd.f32 %v1686, %v1689
  %v1692 = vadd.f32 %v1687, %v1689
  %vm1693 = vcmp.gt.f32.partialorder %v1691, 0.0
  %vm1694 = vcmp.gt.f32.partialorder %v1692, 0.0
  %v1695 = vmin.f32 %v1691, 0.0
  %v1696 = vmin.f32 %v1692, 0.0
  %v1697 = vmul.f32 %v1695, 1.442695
  %v1698 = vpow.pop %v1697
  %v1699 = vmul.f32 %v1696, 1.442695
  %v1700 = vpow.pop %v1699
  %v1701 = vsub.f32 %v1698, 1.0
  %v1702 = vsub.f32 %v1700, 1.0
  %v1703 = vsel %vm1693, %v1691, %v1701
  %v1704 = vsel %vm1694, %v1692, %v1702
  %v1705 = vpack.c.bf16 %v1704, %v1703
  %v1706 = vld [vmem:[%s5 + $0x1c] sm:$0xf]
  %v1708 = vsel %vm472, %v1705, 0
  %v1711 = vsel %vm476, %v1706, 0
  %1713 = vmatprep.subr.bf16.mxu0 0
  %1714 = vmatpush1.bf16.msra.mxu0 %v1711
  %1715 = vmatprep.subr.bf16.mxu0 0
  %1716 = vmatpush1.bf16.msra.mxu0 0
  %1717 = vmatprep.subr.bf16.mxu0 0
  %1718 = vmatpush1.bf16.msra.mxu0 0
  %1719 = vmatprep.subr.bf16.mxu0 0
  %1720 = vmatpush1.bf16.msra.mxu0 0
  %1721 = vmatprep.subr.bf16.mxu0 0
  %1722 = vmatpush1.bf16.msra.mxu0 0
  %1723 = vmatprep.subr.bf16.mxu0 0
  %1724 = vmatpush1.bf16.msra.mxu0 0
  %1725 = vmatprep.subr.bf16.mxu0 0
  %1726 = vmatpush1.bf16.msra.mxu0 0
  %1727 = vmatprep.subr.bf16.mxu0 0
  %1728 = vmatpush1.bf16.msra.mxu0 0
  %1729 = vmatprep.subr.bf16.mxu0 0
  %1730 = vmatpush1.bf16.msra.mxu0 0
  %1731 = vmatprep.subr.bf16.mxu0 0
  %1732 = vmatpush1.bf16.msra.mxu0 0
  %1733 = vmatprep.subr.bf16.mxu0 0
  %1734 = vmatpush1.bf16.msra.mxu0 0
  %1735 = vmatprep.subr.bf16.mxu0 0
  %1736 = vmatpush1.bf16.msra.mxu0 0
  %1737 = vmatprep.subr.bf16.mxu0 0
  %1738 = vmatpush1.bf16.msra.mxu0 0
  %1739 = vmatprep.subr.bf16.mxu0 0
  %1740 = vmatpush1.bf16.msra.mxu0 0
  %1741 = vmatprep.subr.bf16.mxu0 0
  %1742 = vmatpush1.bf16.msra.mxu0 0
  %1743 = vmatprep.subr.bf16.mxu0 0
  %1744 = vmatpush1.bf16.msra.mxu0 0
  %1745 = vmatprep.mubr.bf16.mxu0 0
  %1746 = vmatmul.mubr.bf16.gmra.mrb[0].mxu0 %v1708
  %v1747 = vpop.f32.mrb[0].mxu0
  %v1748 = vadd.f32 0.0, %v1747
  %v1749 = vpop.f32.mrb[0].mxu0
  %v1750 = vpop.f32.mrb[0].mxu0
  %v1751 = vadd.f32 0.0, %v1750
  %v1752 = vpop.f32.mrb[0].mxu0
  %1753 = vdwg.mxu0
  %v1754 = vadd.f32 %v1556, %v1748
  %v1755 = vadd.f32 %v1557, %v1751
  %v1756 = vld [vmem:[%s6] sm:$0x7]
  %v1757 = vlaneseq
  %v1758 = vshrl.u32 %v1757, 7
  %v1759 = vsub.s32 0, %v1758
  %v1760 = vrot.slane %v1756, %v1759
  %v1761 = vmul.f32 %v1754, %v1760
  %v1762 = vmul.f32 %v1755, %v1760
  %1763 = vadd.xlane.f32.xlu0 %v1761
  %v1764 = vpop.xlane.xlu0 %1763
  %1765 = vadd.xlane.f32.xlu0 %v1762
  %v1766 = vpop.xlane.xlu0 %1765
  %v1767 = vlaneseq
  %v1768 = vshrl.u32 %v1767, 7
  %v1769 = vsub.s32 1, %v1768
  %v1770 = vrot.slane %v1756, %v1769
  %v1771 = vmul.f32 %v1754, %v1770
  %v1772 = vmul.f32 %v1755, %v1770
  %1773 = vadd.xlane.f32.xlu0 %v1771
  %v1774 = vpop.xlane.xlu0 %1773
  %1775 = vadd.xlane.f32.xlu0 %v1772
  %v1776 = vpop.xlane.xlu0 %1775
  %1777 = vxpose.xlu0.b32.start [1/16] %v1764, 128
  %1778 = vxpose.xlu0.b32.cont [2/16] %v1766, 128
  %1779 = vxpose.xlu0.b32.cont [3/16] 0.0, 128
  %1780 = vxpose.xlu0.b32.cont [4/16] 0.0, 128
  %1781 = vxpose.xlu0.b32.cont [5/16] 0.0, 128
  %1782 = vxpose.xlu0.b32.cont [6/16] 0.0, 128
  %1783 = vxpose.xlu0.b32.cont [7/16] 0.0, 128
  %1784 = vxpose.xlu0.b32.cont [8/16] 0.0, 128
  %1785 = vxpose.xlu0.b32.cont [9/16] 0.0, 128
  %1786 = vxpose.xlu0.b32.cont [10/16] 0.0, 128
  %1787 = vxpose.xlu0.b32.cont [11/16] 0.0, 128
  %1788 = vxpose.xlu0.b32.cont [12/16] 0.0, 128
  %1789 = vxpose.xlu0.b32.cont [13/16] 0.0, 128
  %1790 = vxpose.xlu0.b32.cont [14/16] 0.0, 128
  %1791 = vxpose.xlu0.b32.cont [15/16] 0.0, 128
  %1792 = vxpose.xlu0.b32.end [16/16] 0.0, 128
  %v1793 = vpop.trf.xlu0
  %v1794 = vpop.trf.xlu0
  %v1795 = vpop.trf.xlu0
  %v1796 = vpop.trf.xlu0
  %v1797 = vpop.trf.xlu0
  %v1798 = vpop.trf.xlu0
  %v1799 = vpop.trf.xlu0
  %v1800 = vpop.trf.xlu0
  %v1801 = vpop.trf.xlu0
  %v1802 = vpop.trf.xlu0
  %v1803 = vpop.trf.xlu0
  %v1804 = vpop.trf.xlu0
  %v1805 = vpop.trf.xlu0
  %v1806 = vpop.trf.xlu0
  %v1807 = vpop.trf.xlu0
  %v1808 = vpop.trf.xlu0
  %v1809 = vlaneseq
  %v1810 = vshrl.u32 %v1809, 7
  %v1811 = vsub.s32 0, %v1810
  %v1812 = vrot.slane %v1793, %v1811
  %v1813 = vadd.f32 %v1774, %v1812
  %v1814 = vadd.f32 %v1776, %v1812
  %vm1815 = vcmp.gt.f32.partialorder %v1813, 0.0
  %vm1816 = vcmp.gt.f32.partialorder %v1814, 0.0
  %v1817 = vmul.f32 %v1813, 0.2
  %v1818 = vmul.f32 %v1814, 0.2
  %v1819 = vsel %vm1815, %v1813, %v1817
  %v1820 = vsel %vm1816, %v1814, %v1818
  %v1821 = vadd.f32 %v1819, %v29
  %v1822 = vadd.f32 %v1820, %v30
  %v1823 = vsel %vm232, %v1821, -inf
  %1824 = vmax.xlane.f32.xlu0 %v1823
  %v1825 = vpop.xlane.xlu0 %1824
  %v1826 = vsel %vm232, %v1822, -inf
  %1827 = vmax.xlane.f32.xlu0 %v1826
  %v1828 = vpop.xlane.xlu0 %1827
  %v1829 = vsub.f32 %v1821, %v1825
  %v1830 = vsub.f32 %v1822, %v1828
  %v1831 = vmul.f32 %v1829, 1.442695
  %v1832 = vpow.pop %v1831
  %v1833 = vmul.f32 %v1830, 1.442695
  %v1834 = vpow.pop %v1833
  %v1835 = vsel %vm232, %v1832, 0.0
  %1836 = vadd.xlane.f32.xlu0 %v1835
  %v1837 = vpop.xlane.xlu0 %1836
  %v1838 = vsel %vm232, %v1834, 0.0
  %1839 = vadd.xlane.f32.xlu0 %v1838
  %v1840 = vpop.xlane.xlu0 %1839
  %v1841 = vpack.c.bf16 %v1834, %v1832
  %v1842 = vpack.c.bf16 %v1755, %v1754
  %v1844 = vsel %vm232, %v1841, 0
  %1846 = vmatprep.subr.bf16.mxu0 0
  %1847 = vmatpush1.bf16.msra.mxu0 %v1842
  %1848 = vmatprep.subr.bf16.mxu0 0
  %1849 = vmatpush1.bf16.msra.mxu0 0
  %1850 = vmatprep.subr.bf16.mxu0 0
  %1851 = vmatpush1.bf16.msra.mxu0 0
  %1852 = vmatprep.subr.bf16.mxu0 0
  %1853 = vmatpush1.bf16.msra.mxu0 0
  %1854 = vmatprep.subr.bf16.mxu0 0
  %1855 = vmatpush1.bf16.msra.mxu0 0
  %1856 = vmatprep.subr.bf16.mxu0 0
  %1857 = vmatpush1.bf16.msra.mxu0 0
  %1858 = vmatprep.subr.bf16.mxu0 0
  %1859 = vmatpush1.bf16.msra.mxu0 0
  %1860 = vmatprep.subr.bf16.mxu0 0
  %1861 = vmatpush1.bf16.msra.mxu0 0
  %1862 = vmatprep.subr.bf16.mxu0 0
  %1863 = vmatpush1.bf16.msra.mxu0 0
  %1864 = vmatprep.subr.bf16.mxu0 0
  %1865 = vmatpush1.bf16.msra.mxu0 0
  %1866 = vmatprep.subr.bf16.mxu0 0
  %1867 = vmatpush1.bf16.msra.mxu0 0
  %1868 = vmatprep.subr.bf16.mxu0 0
  %1869 = vmatpush1.bf16.msra.mxu0 0
  %1870 = vmatprep.subr.bf16.mxu0 0
  %1871 = vmatpush1.bf16.msra.mxu0 0
  %1872 = vmatprep.subr.bf16.mxu0 0
  %1873 = vmatpush1.bf16.msra.mxu0 0
  %1874 = vmatprep.subr.bf16.mxu0 0
  %1875 = vmatpush1.bf16.msra.mxu0 0
  %1876 = vmatprep.subr.bf16.mxu0 0
  %1877 = vmatpush1.bf16.msra.mxu0 0
  %1878 = vmatprep.mubr.bf16.mxu0 0
  %1879 = vmatmul.mubr.bf16.gmra.mrb[0].mxu0 %v1844
  %v1880 = vpop.f32.mrb[0].mxu0
  %v1881 = vadd.f32 0.0, %v1880
  %v1882 = vpop.f32.mrb[0].mxu0
  %v1883 = vpop.f32.mrb[0].mxu0
  %v1884 = vadd.f32 0.0, %v1883
  %v1885 = vpop.f32.mrb[0].mxu0
  %1886 = vdwg.mxu0
  %v1887 = vrcp.pop %v1837
  %v1888 = vrcp.pop %v1840
  %v1889 = vmul.f32 %v1881, %v1887
  %v1890 = vmul.f32 %v1884, %v1888
  %v1891 = vlaneseq
  %v1892 = vshrl.u32 %v1891, 7
  %v1893 = vsub.s32 2, %v1892
  %v1894 = vrot.slane %v1756, %v1893
  %v1895 = vadd.f32 %v1889, %v1894
  %v1896 = vadd.f32 %v1890, %v1894
  %1897 = vst [vmem:[%s7] sm:$0xff] %v1895
  %1898 = vst [vmem:[%s7 + $0x8] sm:$0xff] %v1896
  // Predicated region
  $region30: #{gat_forward.1} parent=0 // pred_check
    _
  $region31: #{gat_forward.1} parent=0 // pred_check_branch
    %1900 = sbr.rel (0) target = $region33
  $region32: #{gat_forward.1} parent=0 // pred_region
    _
  $region33: #{gat_forward.1} parent=0 // pred_fallthru
    _
  // Predicated region
  $region34: #{gat_forward.1} parent=0 // pred_check
    _
  $region35: #{gat_forward.1} parent=0 // pred_check_branch
    %1902 = sbr.rel (0) target = $region37
  $region36: #{gat_forward.1} parent=0 // pred_region
    _
  $region37: #{gat_forward.1} parent=0 // pred_fallthru
    _

</llo_original>
